<compile_context>
chip_gen: v7x
topology: tpu7x:2x2x1
jax: 0.10.0
libtpu: 0.0.40
codegen_flags: <defaults>
</compile_context>

<pallas_src>
import functools

import numpy as np

import jax
import jax.numpy as jnp
from jax.experimental import pallas as pl
from jax.experimental.pallas import tpu as pltpu


# ----------------------------------------------------------------------------- config

def get_maskcnn_v1_conv_config(*, out_channels=16, layer1_kernel=5, layerhigh_kernel=3):
    base = {
        'filter_sizes': [layer1_kernel, layerhigh_kernel, layerhigh_kernel],
        'out_channels': [out_channels, out_channels, out_channels],
        'strides': [1, 1, 1],
        'paddings': ['VALID', 'SAME', 'SAME'],
        'smooth_weights': [0.03, 0, 0],
        'sparse_weights': [0, 0.05, 0.05],
    }
    return [{k: v[i] for k, v in base.items()} for i in range(len(base['filter_sizes']))]


# ----------------------------------------------------------------------------- kernel

def _softplus(x):
    # nn.Softplus(beta=1, threshold=20): linear above threshold, log(1+exp(x)) below.
    # (log(1+exp) kept over log1p for maximally-safe Mosaic lowering; deviation vs
    #  torch is <~1e-30 absolute for strongly negative inputs.)
    return jnp.where(x > 20.0, x, jnp.log(1.0 + jnp.exp(jnp.minimum(x, 20.0))))


def _batchnorm(x, gamma, beta, inv_m, eps):
    # x: (C, M) channel-major. Train-mode batch stats over M = N*H*W per channel,
    # biased variance, eps=1e-3.  Two-pass (centered) variance for numerical safety.
    mean = jnp.sum(x, axis=1, keepdims=True) * inv_m
    xc = x - mean
    var = jnp.sum(xc * xc, axis=1, keepdims=True) * inv_m
    return xc * jax.lax.rsqrt(var + eps) * gamma + beta


def _fused_maskcnn_kernel(*refs, n_same, offsets, lpad, eps):
    # refs (inputs, then output, then scratch):
    #   p0t  (K0*K0, M) bf16      transposed VALID im2col patches of the input
    #   w0   (C, K0*K0) bf16      layer-0 conv weight
    #   g0, b0 (C, 1)   f32       layer-0 BN gamma / beta
    #   per SAME layer: w2 (C, K*K*C) bf16, g (C,1) f32, b (C,1) f32
    #   masks (K*K, M)  bf16      border-validity masks per (ki,kj) tap
    #   wsb  (M, N*n_out) f32     block-diagonal |W_spatial|
    #   wft  (C, N*n_out) f32     tiled |W_feature|
    #   fcb  (1, N*n_out) f32     tiled FC bias
    #   out  (1, N*n_out) f32
    #   rhs  (K*K*C, M) bf16      scratch: stacked shifted/masked activation
    #   pad  (C, lpad+M+lpad) bf16 scratch: zero-haloed activation
    it = iter(refs)
    p0t_ref, w0_ref, g0_ref, b0_ref = next(it), next(it), next(it), next(it)
    same_layers = [(next(it), next(it), next(it)) for _ in range(n_same)]
    masks_ref, wsb_ref, wft_ref, fcb_ref = next(it), next(it), next(it), next(it)
    o_ref = next(it)
    if n_same > 0:
        rhs_ref, pad_ref = next(it), next(it)

    f32, bf16 = jnp.float32, jnp.bfloat16

    # ---- layer 0: VALID conv as one (C,K0*K0)@(K0*K0,M) matmul -> BN -> Softplus --
    conv = jnp.dot(w0_ref[...], p0t_ref[...], preferred_element_type=f32)    # (C, M)
    C, M = conv.shape
    inv_m = 1.0 / M
    act = _batchnorm(conv, g0_ref[...], b0_ref[...], inv_m, eps)

    if n_same > 0:
        act = _softplus(act)
        masks = masks_ref[...]                       # (K*K, M) bf16, values in {0,1}
        pad_ref[...] = jnp.zeros_like(pad_ref)       # zero the halo once (persists)

    # ---- SAME layers: stacked shifted/masked RHS in bf16, then ONE deep matmul ----
    for l, (w_ref, g_ref, b_ref) in enumerate(same_layers):
        pad_ref[:, lpad:lpad + M] = act.astype(bf16)        # single bf16 cast / layer
        for d, off in enumerate(offsets):                   # static, fully unrolled
            tap = pad_ref[:, lpad + off:lpad + off + M]     # shifted window (static)
            if off != 0:
                tap = tap * masks[d:d + 1, :]               # zero cross-border cols
            rhs_ref[d * C:(d + 1) * C, :] = tap
        conv = jnp.dot(w_ref[...], rhs_ref[...],
                       preferred_element_type=f32)          # (C,K*K*C)@(K*K*C,M)
        act = _batchnorm(conv, g_ref[...], b_ref[...], inv_m, eps)
        if l < n_same - 1:
            act = _softplus(act)           # no Softplus after the last conv's BN

    # ---- FactoredLinear2D head: one lane-aligned matmul, weight never built full --
    s = jnp.dot(act, wsb_ref[...], preferred_element_type=f32)    # (C, N*n_out)
    out = jnp.sum(s * wft_ref[...], axis=0, keepdims=True) + fcb_ref[...]
    o_ref[...] = _softplus(out)                                   # (1, N*n_out)


# ---------------------------------------------------------------------- wrapper glue

def _layer1_patches_T(x_nchw, K):
    """VALID im2col of the (N,1,H,W) input, transposed to (K*K, N*Ho*Wo); cols (n,i,j)."""
    N, cin, H, W = x_nchw.shape
    assert cin == 1
    Ho, Wo = H - K + 1, W - K + 1
    x = x_nchw[:, 0, :, :]
    rows = [x[:, ki:ki + Ho, kj:kj + Wo].reshape(1, N * Ho * Wo)
            for ki in range(K) for kj in range(K)]
    return jnp.concatenate(rows, axis=0), Ho, Wo


def _same_conv_offsets_and_masks(N, H, W, K):
    """Static flat-index tap offsets and border-validity masks for SAME stride-1 conv."""
    pad = (K - 1) // 2
    M = N * H * W
    m = np.arange(M)
    n_idx = m // (H * W)
    i_idx = (m // W) % H
    j_idx = m % W
    offsets, masks = [], []
    for ki in range(K):
        for kj in range(K):
            di, dj = ki - pad, kj - pad
            off = di * W + dj
            valid = ((i_idx + di >= 0) & (i_idx + di < H) &
                     (j_idx + dj >= 0) & (j_idx + dj < W))
            # Review safety check: wherever the mask keeps a column, the shifted flat
            # index must be in range AND inside the SAME image (so a shifted window —
            # or an equivalent circular roll — plus this mask is an exact SAME conv tap).
            src = m + off
            assert np.all(~valid | ((src >= 0) & (src < M) & (src // (H * W) == n_idx)))
            offsets.append(off)
            masks.append(valid)
    return tuple(offsets), np.stack(masks, axis=0).astype(np.float32)


def maskcnn_v1_forward(x_nchw, params, conv_config):
    n_layers = len(conv_config)
    N = x_nchw.shape[0]
    eps = 1e-3
    f32, bf16 = jnp.float32, jnp.bfloat16

    # --- layer 0 (VALID, Cin=1): transposed im2col patches built from the raw input.
    # TODO(synk): at large batch, build these patches in-kernel from the raw image to
    # avoid the ~K0^2 HBM read amplification (matters first on v5e bandwidth).
    K0 = conv_config[0]['filter_sizes']
    C = conv_config[0]['out_channels']
    assert conv_config[0]['paddings'] == 'VALID' and conv_config[0]['strides'] == 1
    p0t, Ho, Wo = _layer1_patches_T(x_nchw.astype(f32), K0)
    HW, M = Ho * Wo, N * Ho * Wo

    w0 = params['conv0_w']                                     # (C, 1, K0, K0)
    assert w0.shape == (C, 1, K0, K0)
    args = [
        p0t.astype(bf16),
        w0.reshape(C, K0 * K0).astype(bf16),
        params['bn0_gamma'].reshape(C, 1).astype(f32),
        params['bn0_beta'].reshape(C, 1).astype(f32),
    ]

    # --- SAME layers: weight pre-reshaped so all K*K taps become ONE matmul.
    n_same = n_layers - 1
    Ks = conv_config[1]['filter_sizes'] if n_same > 0 else 1
    for idx in range(1, n_layers):
        layer = conv_config[idx]
        K = layer['filter_sizes']
        assert layer['paddings'] == 'SAME' and layer['strides'] == 1
        assert layer['out_channels'] == C and K == Ks
        w = params[f'conv{idx}_w']                             # (Cout, Cin, K, K)
        w2 = jnp.transpose(w, (0, 2, 3, 1)).reshape(C, K * K * C)   # [co, (ki*K+kj)*C+ci]
        args += [
            w2.astype(bf16),
            params[f'bn{idx}_gamma'].reshape(C, 1).astype(f32),
            params[f'bn{idx}_beta'].reshape(C, 1).astype(f32),
        ]
    if n_same > 0:
        offsets, mask_np = _same_conv_offsets_and_masks(N, Ho, Wo, Ks)
    else:
        offsets, mask_np = (), np.ones((1, M), np.float32)

    # --- FactoredLinear2D parameters: |.| taken here; spatial weight made block-diag
    # so the head is one lane-aligned matmul (no per-image unaligned slices).
    ws = params['fc_w_spatial']                                # (n_out, Ho, Wo)
    wf = params['fc_w_feature']                                # (n_out, C)
    n_out = ws.shape[0]
    ws_abs = jnp.abs(ws.reshape(n_out, HW)).T.astype(f32)      # (HW, n_out)
    wf_abs = jnp.abs(wf).T.astype(f32)                         # (C, n_out)
    wsb = jnp.kron(jnp.eye(N, dtype=f32), ws_abs)              # (M, N*n_out) block-diag
    wft = jnp.tile(wf_abs, (1, N))                             # (C, N*n_out)
    fcb = jnp.tile(params['fc_bias'].reshape(1, n_out).astype(f32), (1, N))

    args += [jnp.asarray(mask_np, dtype=bf16), wsb, wft, fcb]

    lpad = 128                     # lane-aligned halo; >= max |tap offset| (= pad*Wo+pad)
    scratch = []
    if n_same > 0:
        assert max(abs(o) for o in offsets) <= lpad
        scratch = [pltpu.VMEM((Ks * Ks * C, M), bf16),           # stacked RHS
                   pltpu.VMEM((C, lpad + M + lpad), bf16)]       # zero-haloed activation

    kernel = functools.partial(_fused_maskcnn_kernel,
                               n_same=n_same, offsets=offsets, lpad=lpad, eps=eps)

    # Single gridless invocation: every operand is a whole-array VMEM block (<0.3 MB).
    # TODO(synk): at production batch add a batch grid axis ("parallel") with a
    # cross-core BN partial-sum exchange to use both v7x TensorCores.
    out = pl.pallas_call(
        kernel,
        out_shape=jax.ShapeDtypeStruct((1, N * n_out), f32),
        in_specs=[pl.BlockSpec(memory_space=pltpu.MemorySpace.VMEM) for _ in args],
        out_specs=pl.BlockSpec(memory_space=pltpu.MemorySpace.VMEM),
        scratch_shapes=scratch,
    )(*args)
    return out.reshape(N, n_out)


# ---------------------------------------------------------------------------- init/main

def init_params(key, conv_config, input_size, n_out,
                conv_std=0.01, fc_spatial_std=0.01, fc_feature_std=0.01):
    params = {}
    cin = 1
    H, W = input_size
    for idx, layer in enumerate(conv_config):
        K = layer['filter_sizes']
        O = layer['out_channels']
        pad = 0 if layer['paddings'] == 'VALID' else (K - 1) // 2
        key, k = jax.random.split(key)
        params[f'conv{idx}_w'] = conv_std * jax.random.normal(k, (O, cin, K, K), jnp.float32)
        params[f'bn{idx}_gamma'] = jnp.ones((O,), jnp.float32)   # no_learning_params -> 1
        params[f'bn{idx}_beta'] = jnp.zeros((O,), jnp.float32)   # beta init 0
        H = (H - K + 2 * pad) + 1
        W = (W - K + 2 * pad) + 1
        cin = O
    key, ks, kf = jax.random.split(key, 3)
    params['fc_w_spatial'] = fc_spatial_std * jax.random.normal(ks, (n_out, H, W), jnp.float32)
    params['fc_w_feature'] = fc_feature_std * jax.random.normal(kf, (n_out, cin), jnp.float32)
    params['fc_bias'] = jnp.zeros((n_out,), jnp.float32)         # mean_response=None -> zeros
    return params, (H, W)


if __name__ == "__main__":
    key = jax.random.PRNGKey(0)
    batch, input_size, n_units = 2, (16, 16), 8
    conv_config = get_maskcnn_v1_conv_config(out_channels=16, layer1_kernel=5,
                                             layerhigh_kernel=3)

    key, kp, kx = jax.random.split(key, 3)
    params, _ = init_params(kp, conv_config, input_size, n_units)
    x = jax.random.normal(kx, (batch, 1, input_size[0], input_size[1]), jnp.float32)  # NCHW

    fwd = jax.jit(lambda xx, pp: maskcnn_v1_forward(xx, pp, conv_config))
    out = jax.block_until_ready(fwd(x, params))
    assert out.shape == (batch, n_units) and bool(jnp.all(jnp.isfinite(out)))
    print("KERNEL_OK")
</pallas_src>

<mosaic_0001>
module attributes {stable_mosaic.version = 11 : i64} {
  func.func @_fused_maskcnn_kernel(%arg0: memref<25x288xbf16, #tpu.memory_space<vmem>>, %arg1: memref<16x25xbf16, #tpu.memory_space<vmem>>, %arg2: memref<16x1xf32, #tpu.memory_space<vmem>>, %arg3: memref<16x1xf32, #tpu.memory_space<vmem>>, %arg4: memref<16x144xbf16, #tpu.memory_space<vmem>>, %arg5: memref<16x1xf32, #tpu.memory_space<vmem>>, %arg6: memref<16x1xf32, #tpu.memory_space<vmem>>, %arg7: memref<16x144xbf16, #tpu.memory_space<vmem>>, %arg8: memref<16x1xf32, #tpu.memory_space<vmem>>, %arg9: memref<16x1xf32, #tpu.memory_space<vmem>>, %arg10: memref<9x288xbf16, #tpu.memory_space<vmem>>, %arg11: memref<288x16xf32, #tpu.memory_space<vmem>>, %arg12: memref<16x16xf32, #tpu.memory_space<vmem>>, %arg13: memref<1x16xf32, #tpu.memory_space<vmem>>, %arg14: memref<1x16xf32, #tpu.memory_space<vmem>>, %arg15: memref<144x288xbf16, #tpu.memory_space<vmem>>, %arg16: memref<16x544xbf16, #tpu.memory_space<vmem>>) attributes {dimension_semantics = [], scalar_prefetch = 0 : i64, scratch_operands = 2 : i64, tpu.core_type = #tpu.core_type<tc>} {
    %c0 = arith.constant 0 : index
    %c0_0 = arith.constant 0 : index
    %0 = vector.load %arg1[%c0, %c0_0] : memref<16x25xbf16, #tpu.memory_space<vmem>>, vector<16x25xbf16>
    %c0_1 = arith.constant 0 : index
    %c0_2 = arith.constant 0 : index
    %1 = vector.load %arg0[%c0_1, %c0_2] : memref<25x288xbf16, #tpu.memory_space<vmem>>, vector<25x288xbf16>
    %cst = arith.constant dense<0.000000e+00> : vector<16x288xf32>
    %2 = tpu.matmul %0, %1, %cst {dimension_numbers = #tpu.dot_dimension_numbers<[1], [0], [0], [1], [0, 0, 1, 1], [], []>} : vector<16x25xbf16>, vector<25x288xbf16>, vector<16x288xf32> -> vector<16x288xf32>
    %c0_3 = arith.constant 0 : index
    %c0_4 = arith.constant 0 : index
    %3 = vector.load %arg2[%c0_3, %c0_4] : memref<16x1xf32, #tpu.memory_space<vmem>>, vector<16x1xf32>
    %c0_5 = arith.constant 0 : index
    %c0_6 = arith.constant 0 : index
    %4 = vector.load %arg3[%c0_5, %c0_6] : memref<16x1xf32, #tpu.memory_space<vmem>>, vector<16x1xf32>
    %cst_7 = arith.constant dense<0.000000e+00> : vector<16xf32>
    %5 = vector.multi_reduction <add>, %2, %cst_7 [1] : vector<16x288xf32> to vector<16xf32>
    %6 = vector.shape_cast %5 : vector<16xf32> to vector<16x1xf32>
    %cst_8 = arith.constant 0.00347222225 : f32
    %7 = vector.broadcast %cst_8 : f32 to vector<16x1xf32>
    %8 = arith.mulf %6, %7 : vector<16x1xf32>
    %9 = vector.broadcast %8 : vector<16x1xf32> to vector<16x288xf32>
    %10 = arith.subf %2, %9 : vector<16x288xf32>
    %11 = arith.mulf %10, %10 : vector<16x288xf32>
    %cst_9 = arith.constant dense<0.000000e+00> : vector<16xf32>
    %12 = vector.multi_reduction <add>, %11, %cst_9 [1] : vector<16x288xf32> to vector<16xf32>
    %13 = vector.shape_cast %12 : vector<16xf32> to vector<16x1xf32>
    %cst_10 = arith.constant 0.00347222225 : f32
    %14 = vector.broadcast %cst_10 : f32 to vector<16x1xf32>
    %15 = arith.mulf %13, %14 : vector<16x1xf32>
    %cst_11 = arith.constant 1.000000e-03 : f32
    %16 = vector.broadcast %cst_11 : f32 to vector<16x1xf32>
    %17 = arith.addf %15, %16 : vector<16x1xf32>
    %18 = math.rsqrt %17 : vector<16x1xf32>
    %19 = vector.broadcast %18 : vector<16x1xf32> to vector<16x288xf32>
    %20 = arith.mulf %10, %19 : vector<16x288xf32>
    %21 = vector.broadcast %3 : vector<16x1xf32> to vector<16x288xf32>
    %22 = arith.mulf %20, %21 : vector<16x288xf32>
    %23 = vector.broadcast %4 : vector<16x1xf32> to vector<16x288xf32>
    %24 = arith.addf %22, %23 : vector<16x288xf32>
    %cst_12 = arith.constant 2.000000e+01 : f32
    %25 = vector.broadcast %cst_12 : f32 to vector<16x288xf32>
    %26 = arith.cmpf ogt, %24, %25 : vector<16x288xf32>
    %cst_13 = arith.constant 2.000000e+01 : f32
    %27 = vector.broadcast %cst_13 : f32 to vector<16x288xf32>
    %28 = arith.minimumf %24, %27 : vector<16x288xf32>
    %29 = math.exp %28 : vector<16x288xf32>
    %cst_14 = arith.constant 1.000000e+00 : f32
    %30 = vector.broadcast %cst_14 : f32 to vector<16x288xf32>
    %31 = arith.addf %30, %29 : vector<16x288xf32>
    %32 = math.log %31 : vector<16x288xf32>
    %33 = arith.select %26, %24, %32 : vector<16x288xi1>, vector<16x288xf32>
    %c0_15 = arith.constant 0 : index
    %c0_16 = arith.constant 0 : index
    %34 = vector.load %arg10[%c0_15, %c0_16] : memref<9x288xbf16, #tpu.memory_space<vmem>>, vector<9x288xbf16>
    %cst_17 = arith.constant 0.000000e+00 : bf16
    %35 = vector.broadcast %cst_17 : bf16 to vector<16x544xbf16>
    %c0_18 = arith.constant 0 : index
    %c0_19 = arith.constant 0 : index
    %36 = vector.load %arg16[%c0_18, %c0_19] : memref<16x544xbf16, #tpu.memory_space<vmem>>, vector<16x544xbf16>
    tpu.vector_store %arg16[%c0_18, %c0_19], %35 {strides = array<i32>} : memref<16x544xbf16, #tpu.memory_space<vmem>>, vector<16x544xbf16>,
    %37 = arith.truncf %33 : vector<16x288xf32> to vector<16x288xbf16>
    %c0_20 = arith.constant 0 : index
    %c128 = arith.constant 128 : index
    %38 = vector.load %arg16[%c0_20, %c128] : memref<16x544xbf16, #tpu.memory_space<vmem>>, vector<16x288xbf16>
    tpu.vector_store %arg16[%c0_20, %c128], %37 {strides = array<i32>} : memref<16x544xbf16, #tpu.memory_space<vmem>>, vector<16x288xbf16>,
    %c0_21 = arith.constant 0 : index
    %c115 = arith.constant 115 : index
    %39 = vector.load %arg16[%c0_21, %c115] : memref<16x544xbf16, #tpu.memory_space<vmem>>, vector<16x288xbf16>
    %40 = vector.extract_strided_slice %34 {offsets = [0, 0], sizes = [1, 288], strides = [1, 1]} : vector<9x288xbf16> to vector<1x288xbf16>
    %41 = vector.broadcast %40 : vector<1x288xbf16> to vector<16x288xbf16>
    %42 = arith.mulf %39, %41 : vector<16x288xbf16>
    %c0_22 = arith.constant 0 : index
    %c0_23 = arith.constant 0 : index
    %43 = vector.load %arg15[%c0_22, %c0_23] : memref<144x288xbf16, #tpu.memory_space<vmem>>, vector<16x288xbf16>
    tpu.vector_store %arg15[%c0_22, %c0_23], %42 {strides = array<i32>} : memref<144x288xbf16, #tpu.memory_space<vmem>>, vector<16x288xbf16>,
    %c0_24 = arith.constant 0 : index
    %c116 = arith.constant 116 : index
    %44 = vector.load %arg16[%c0_24, %c116] : memref<16x544xbf16, #tpu.memory_space<vmem>>, vector<16x288xbf16>
    %45 = vector.extract_strided_slice %34 {offsets = [1, 0], sizes = [1, 288], strides = [1, 1]} : vector<9x288xbf16> to vector<1x288xbf16>
    %46 = vector.broadcast %45 : vector<1x288xbf16> to vector<16x288xbf16>
    %47 = arith.mulf %44, %46 : vector<16x288xbf16>
    %c16 = arith.constant 16 : index
    %c0_25 = arith.constant 0 : index
    %48 = vector.load %arg15[%c16, %c0_25] : memref<144x288xbf16, #tpu.memory_space<vmem>>, vector<16x288xbf16>
    tpu.vector_store %arg15[%c16, %c0_25], %47 {strides = array<i32>} : memref<144x288xbf16, #tpu.memory_space<vmem>>, vector<16x288xbf16>,
    %c0_26 = arith.constant 0 : index
    %c117 = arith.constant 117 : index
    %49 = vector.load %arg16[%c0_26, %c117] : memref<16x544xbf16, #tpu.memory_space<vmem>>, vector<16x288xbf16>
    %50 = vector.extract_strided_slice %34 {offsets = [2, 0], sizes = [1, 288], strides = [1, 1]} : vector<9x288xbf16> to vector<1x288xbf16>
    %51 = vector.broadcast %50 : vector<1x288xbf16> to vector<16x288xbf16>
    %52 = arith.mulf %49, %51 : vector<16x288xbf16>
    %c32 = arith.constant 32 : index
    %c0_27 = arith.constant 0 : index
    %53 = vector.load %arg15[%c32, %c0_27] : memref<144x288xbf16, #tpu.memory_space<vmem>>, vector<16x288xbf16>
    tpu.vector_store %arg15[%c32, %c0_27], %52 {strides = array<i32>} : memref<144x288xbf16, #tpu.memory_space<vmem>>, vector<16x288xbf16>,
    %c0_28 = arith.constant 0 : index
    %c127 = arith.constant 127 : index
    %54 = vector.load %arg16[%c0_28, %c127] : memref<16x544xbf16, #tpu.memory_space<vmem>>, vector<16x288xbf16>
    %55 = vector.extract_strided_slice %34 {offsets = [3, 0], sizes = [1, 288], strides = [1, 1]} : vector<9x288xbf16> to vector<1x288xbf16>
    %56 = vector.broadcast %55 : vector<1x288xbf16> to vector<16x288xbf16>
    %57 = arith.mulf %54, %56 : vector<16x288xbf16>
    %c48 = arith.constant 48 : index
    %c0_29 = arith.constant 0 : index
    %58 = vector.load %arg15[%c48, %c0_29] : memref<144x288xbf16, #tpu.memory_space<vmem>>, vector<16x288xbf16>
    tpu.vector_store %arg15[%c48, %c0_29], %57 {strides = array<i32>} : memref<144x288xbf16, #tpu.memory_space<vmem>>, vector<16x288xbf16>,
    %c0_30 = arith.constant 0 : index
    %c128_31 = arith.constant 128 : index
    %59 = vector.load %arg16[%c0_30, %c128_31] : memref<16x544xbf16, #tpu.memory_space<vmem>>, vector<16x288xbf16>
    %c64 = arith.constant 64 : index
    %c0_32 = arith.constant 0 : index
    %60 = vector.load %arg15[%c64, %c0_32] : memref<144x288xbf16, #tpu.memory_space<vmem>>, vector<16x288xbf16>
    tpu.vector_store %arg15[%c64, %c0_32], %59 {strides = array<i32>} : memref<144x288xbf16, #tpu.memory_space<vmem>>, vector<16x288xbf16>,
    %c0_33 = arith.constant 0 : index
    %c129 = arith.constant 129 : index
    %61 = vector.load %arg16[%c0_33, %c129] : memref<16x544xbf16, #tpu.memory_space<vmem>>, vector<16x288xbf16>
    %62 = vector.extract_strided_slice %34 {offsets = [5, 0], sizes = [1, 288], strides = [1, 1]} : vector<9x288xbf16> to vector<1x288xbf16>
    %63 = vector.broadcast %62 : vector<1x288xbf16> to vector<16x288xbf16>
    %64 = arith.mulf %61, %63 : vector<16x288xbf16>
    %c80 = arith.constant 80 : index
    %c0_34 = arith.constant 0 : index
    %65 = vector.load %arg15[%c80, %c0_34] : memref<144x288xbf16, #tpu.memory_space<vmem>>, vector<16x288xbf16>
    tpu.vector_store %arg15[%c80, %c0_34], %64 {strides = array<i32>} : memref<144x288xbf16, #tpu.memory_space<vmem>>, vector<16x288xbf16>,
    %c0_35 = arith.constant 0 : index
    %c139 = arith.constant 139 : index
    %66 = vector.load %arg16[%c0_35, %c139] : memref<16x544xbf16, #tpu.memory_space<vmem>>, vector<16x288xbf16>
    %67 = vector.extract_strided_slice %34 {offsets = [6, 0], sizes = [1, 288], strides = [1, 1]} : vector<9x288xbf16> to vector<1x288xbf16>
    %68 = vector.broadcast %67 : vector<1x288xbf16> to vector<16x288xbf16>
    %69 = arith.mulf %66, %68 : vector<16x288xbf16>
    %c96 = arith.constant 96 : index
    %c0_36 = arith.constant 0 : index
    %70 = vector.load %arg15[%c96, %c0_36] : memref<144x288xbf16, #tpu.memory_space<vmem>>, vector<16x288xbf16>
    tpu.vector_store %arg15[%c96, %c0_36], %69 {strides = array<i32>} : memref<144x288xbf16, #tpu.memory_space<vmem>>, vector<16x288xbf16>,
    %c0_37 = arith.constant 0 : index
    %c140 = arith.constant 140 : index
    %71 = vector.load %arg16[%c0_37, %c140] : memref<16x544xbf16, #tpu.memory_space<vmem>>, vector<16x288xbf16>
    %72 = vector.extract_strided_slice %34 {offsets = [7, 0], sizes = [1, 288], strides = [1, 1]} : vector<9x288xbf16> to vector<1x288xbf16>
    %73 = vector.broadcast %72 : vector<1x288xbf16> to vector<16x288xbf16>
    %74 = arith.mulf %71, %73 : vector<16x288xbf16>
    %c112 = arith.constant 112 : index
    %c0_38 = arith.constant 0 : index
    %75 = vector.load %arg15[%c112, %c0_38] : memref<144x288xbf16, #tpu.memory_space<vmem>>, vector<16x288xbf16>
    tpu.vector_store %arg15[%c112, %c0_38], %74 {strides = array<i32>} : memref<144x288xbf16, #tpu.memory_space<vmem>>, vector<16x288xbf16>,
    %c0_39 = arith.constant 0 : index
    %c141 = arith.constant 141 : index
    %76 = vector.load %arg16[%c0_39, %c141] : memref<16x544xbf16, #tpu.memory_space<vmem>>, vector<16x288xbf16>
    %77 = vector.extract_strided_slice %34 {offsets = [8, 0], sizes = [1, 288], strides = [1, 1]} : vector<9x288xbf16> to vector<1x288xbf16>
    %78 = vector.broadcast %77 : vector<1x288xbf16> to vector<16x288xbf16>
    %79 = arith.mulf %76, %78 : vector<16x288xbf16>
    %c128_40 = arith.constant 128 : index
    %c0_41 = arith.constant 0 : index
    %80 = vector.load %arg15[%c128_40, %c0_41] : memref<144x288xbf16, #tpu.memory_space<vmem>>, vector<16x288xbf16>
    tpu.vector_store %arg15[%c128_40, %c0_41], %79 {strides = array<i32>} : memref<144x288xbf16, #tpu.memory_space<vmem>>, vector<16x288xbf16>,
    %c0_42 = arith.constant 0 : index
    %c0_43 = arith.constant 0 : index
    %81 = vector.load %arg4[%c0_42, %c0_43] : memref<16x144xbf16, #tpu.memory_space<vmem>>, vector<16x144xbf16>
    %c0_44 = arith.constant 0 : index
    %c0_45 = arith.constant 0 : index
    %82 = vector.load %arg15[%c0_44, %c0_45] : memref<144x288xbf16, #tpu.memory_space<vmem>>, vector<144x288xbf16>
    %cst_46 = arith.constant dense<0.000000e+00> : vector<16x288xf32>
    %83 = tpu.matmul %81, %82, %cst_46 {dimension_numbers = #tpu.dot_dimension_numbers<[1], [0], [0], [1], [0, 0, 1, 1], [], []>} : vector<16x144xbf16>, vector<144x288xbf16>, vector<16x288xf32> -> vector<16x288xf32>
    %c0_47 = arith.constant 0 : index
    %c0_48 = arith.constant 0 : index
    %84 = vector.load %arg5[%c0_47, %c0_48] : memref<16x1xf32, #tpu.memory_space<vmem>>, vector<16x1xf32>
    %c0_49 = arith.constant 0 : index
    %c0_50 = arith.constant 0 : index
    %85 = vector.load %arg6[%c0_49, %c0_50] : memref<16x1xf32, #tpu.memory_space<vmem>>, vector<16x1xf32>
    %cst_51 = arith.constant dense<0.000000e+00> : vector<16xf32>
    %86 = vector.multi_reduction <add>, %83, %cst_51 [1] : vector<16x288xf32> to vector<16xf32>
    %87 = vector.shape_cast %86 : vector<16xf32> to vector<16x1xf32>
    %cst_52 = arith.constant 0.00347222225 : f32
    %88 = vector.broadcast %cst_52 : f32 to vector<16x1xf32>
    %89 = arith.mulf %87, %88 : vector<16x1xf32>
    %90 = vector.broadcast %89 : vector<16x1xf32> to vector<16x288xf32>
    %91 = arith.subf %83, %90 : vector<16x288xf32>
    %92 = arith.mulf %91, %91 : vector<16x288xf32>
    %cst_53 = arith.constant dense<0.000000e+00> : vector<16xf32>
    %93 = vector.multi_reduction <add>, %92, %cst_53 [1] : vector<16x288xf32> to vector<16xf32>
    %94 = vector.shape_cast %93 : vector<16xf32> to vector<16x1xf32>
    %cst_54 = arith.constant 0.00347222225 : f32
    %95 = vector.broadcast %cst_54 : f32 to vector<16x1xf32>
    %96 = arith.mulf %94, %95 : vector<16x1xf32>
    %cst_55 = arith.constant 1.000000e-03 : f32
    %97 = vector.broadcast %cst_55 : f32 to vector<16x1xf32>
    %98 = arith.addf %96, %97 : vector<16x1xf32>
    %99 = math.rsqrt %98 : vector<16x1xf32>
    %100 = vector.broadcast %99 : vector<16x1xf32> to vector<16x288xf32>
    %101 = arith.mulf %91, %100 : vector<16x288xf32>
    %102 = vector.broadcast %84 : vector<16x1xf32> to vector<16x288xf32>
    %103 = arith.mulf %101, %102 : vector<16x288xf32>
    %104 = vector.broadcast %85 : vector<16x1xf32> to vector<16x288xf32>
    %105 = arith.addf %103, %104 : vector<16x288xf32>
    %cst_56 = arith.constant 2.000000e+01 : f32
    %106 = vector.broadcast %cst_56 : f32 to vector<16x288xf32>
    %107 = arith.cmpf ogt, %105, %106 : vector<16x288xf32>
    %cst_57 = arith.constant 2.000000e+01 : f32
    %108 = vector.broadcast %cst_57 : f32 to vector<16x288xf32>
    %109 = arith.minimumf %105, %108 : vector<16x288xf32>
    %110 = math.exp %109 : vector<16x288xf32>
    %cst_58 = arith.constant 1.000000e+00 : f32
    %111 = vector.broadcast %cst_58 : f32 to vector<16x288xf32>
    %112 = arith.addf %111, %110 : vector<16x288xf32>
    %113 = math.log %112 : vector<16x288xf32>
    %114 = arith.select %107, %105, %113 : vector<16x288xi1>, vector<16x288xf32>
    %115 = arith.truncf %114 : vector<16x288xf32> to vector<16x288xbf16>
    %c0_59 = arith.constant 0 : index
    %c128_60 = arith.constant 128 : index
    %116 = vector.load %arg16[%c0_59, %c128_60] : memref<16x544xbf16, #tpu.memory_space<vmem>>, vector<16x288xbf16>
    tpu.vector_store %arg16[%c0_59, %c128_60], %115 {strides = array<i32>} : memref<16x544xbf16, #tpu.memory_space<vmem>>, vector<16x288xbf16>,
    %c0_61 = arith.constant 0 : index
    %c115_62 = arith.constant 115 : index
    %117 = vector.load %arg16[%c0_61, %c115_62] : memref<16x544xbf16, #tpu.memory_space<vmem>>, vector<16x288xbf16>
    %118 = vector.extract_strided_slice %34 {offsets = [0, 0], sizes = [1, 288], strides = [1, 1]} : vector<9x288xbf16> to vector<1x288xbf16>
    %119 = vector.broadcast %118 : vector<1x288xbf16> to vector<16x288xbf16>
    %120 = arith.mulf %117, %119 : vector<16x288xbf16>
    %c0_63 = arith.constant 0 : index
    %c0_64 = arith.constant 0 : index
    %121 = vector.load %arg15[%c0_63, %c0_64] : memref<144x288xbf16, #tpu.memory_space<vmem>>, vector<16x288xbf16>
    tpu.vector_store %arg15[%c0_63, %c0_64], %120 {strides = array<i32>} : memref<144x288xbf16, #tpu.memory_space<vmem>>, vector<16x288xbf16>,
    %c0_65 = arith.constant 0 : index
    %c116_66 = arith.constant 116 : index
    %122 = vector.load %arg16[%c0_65, %c116_66] : memref<16x544xbf16, #tpu.memory_space<vmem>>, vector<16x288xbf16>
    %123 = vector.extract_strided_slice %34 {offsets = [1, 0], sizes = [1, 288], strides = [1, 1]} : vector<9x288xbf16> to vector<1x288xbf16>
    %124 = vector.broadcast %123 : vector<1x288xbf16> to vector<16x288xbf16>
    %125 = arith.mulf %122, %124 : vector<16x288xbf16>
    %c16_67 = arith.constant 16 : index
    %c0_68 = arith.constant 0 : index
    %126 = vector.load %arg15[%c16_67, %c0_68] : memref<144x288xbf16, #tpu.memory_space<vmem>>, vector<16x288xbf16>
    tpu.vector_store %arg15[%c16_67, %c0_68], %125 {strides = array<i32>} : memref<144x288xbf16, #tpu.memory_space<vmem>>, vector<16x288xbf16>,
    %c0_69 = arith.constant 0 : index
    %c117_70 = arith.constant 117 : index
    %127 = vector.load %arg16[%c0_69, %c117_70] : memref<16x544xbf16, #tpu.memory_space<vmem>>, vector<16x288xbf16>
    %128 = vector.extract_strided_slice %34 {offsets = [2, 0], sizes = [1, 288], strides = [1, 1]} : vector<9x288xbf16> to vector<1x288xbf16>
    %129 = vector.broadcast %128 : vector<1x288xbf16> to vector<16x288xbf16>
    %130 = arith.mulf %127, %129 : vector<16x288xbf16>
    %c32_71 = arith.constant 32 : index
    %c0_72 = arith.constant 0 : index
    %131 = vector.load %arg15[%c32_71, %c0_72] : memref<144x288xbf16, #tpu.memory_space<vmem>>, vector<16x288xbf16>
    tpu.vector_store %arg15[%c32_71, %c0_72], %130 {strides = array<i32>} : memref<144x288xbf16, #tpu.memory_space<vmem>>, vector<16x288xbf16>,
    %c0_73 = arith.constant 0 : index
    %c127_74 = arith.constant 127 : index
    %132 = vector.load %arg16[%c0_73, %c127_74] : memref<16x544xbf16, #tpu.memory_space<vmem>>, vector<16x288xbf16>
    %133 = vector.extract_strided_slice %34 {offsets = [3, 0], sizes = [1, 288], strides = [1, 1]} : vector<9x288xbf16> to vector<1x288xbf16>
    %134 = vector.broadcast %133 : vector<1x288xbf16> to vector<16x288xbf16>
    %135 = arith.mulf %132, %134 : vector<16x288xbf16>
    %c48_75 = arith.constant 48 : index
    %c0_76 = arith.constant 0 : index
    %136 = vector.load %arg15[%c48_75, %c0_76] : memref<144x288xbf16, #tpu.memory_space<vmem>>, vector<16x288xbf16>
    tpu.vector_store %arg15[%c48_75, %c0_76], %135 {strides = array<i32>} : memref<144x288xbf16, #tpu.memory_space<vmem>>, vector<16x288xbf16>,
    %c0_77 = arith.constant 0 : index
    %c128_78 = arith.constant 128 : index
    %137 = vector.load %arg16[%c0_77, %c128_78] : memref<16x544xbf16, #tpu.memory_space<vmem>>, vector<16x288xbf16>
    %c64_79 = arith.constant 64 : index
    %c0_80 = arith.constant 0 : index
    %138 = vector.load %arg15[%c64_79, %c0_80] : memref<144x288xbf16, #tpu.memory_space<vmem>>, vector<16x288xbf16>
    tpu.vector_store %arg15[%c64_79, %c0_80], %137 {strides = array<i32>} : memref<144x288xbf16, #tpu.memory_space<vmem>>, vector<16x288xbf16>,
    %c0_81 = arith.constant 0 : index
    %c129_82 = arith.constant 129 : index
    %139 = vector.load %arg16[%c0_81, %c129_82] : memref<16x544xbf16, #tpu.memory_space<vmem>>, vector<16x288xbf16>
    %140 = vector.extract_strided_slice %34 {offsets = [5, 0], sizes = [1, 288], strides = [1, 1]} : vector<9x288xbf16> to vector<1x288xbf16>
    %141 = vector.broadcast %140 : vector<1x288xbf16> to vector<16x288xbf16>
    %142 = arith.mulf %139, %141 : vector<16x288xbf16>
    %c80_83 = arith.constant 80 : index
    %c0_84 = arith.constant 0 : index
    %143 = vector.load %arg15[%c80_83, %c0_84] : memref<144x288xbf16, #tpu.memory_space<vmem>>, vector<16x288xbf16>
    tpu.vector_store %arg15[%c80_83, %c0_84], %142 {strides = array<i32>} : memref<144x288xbf16, #tpu.memory_space<vmem>>, vector<16x288xbf16>,
    %c0_85 = arith.constant 0 : index
    %c139_86 = arith.constant 139 : index
    %144 = vector.load %arg16[%c0_85, %c139_86] : memref<16x544xbf16, #tpu.memory_space<vmem>>, vector<16x288xbf16>
    %145 = vector.extract_strided_slice %34 {offsets = [6, 0], sizes = [1, 288], strides = [1, 1]} : vector<9x288xbf16> to vector<1x288xbf16>
    %146 = vector.broadcast %145 : vector<1x288xbf16> to vector<16x288xbf16>
    %147 = arith.mulf %144, %146 : vector<16x288xbf16>
    %c96_87 = arith.constant 96 : index
    %c0_88 = arith.constant 0 : index
    %148 = vector.load %arg15[%c96_87, %c0_88] : memref<144x288xbf16, #tpu.memory_space<vmem>>, vector<16x288xbf16>
    tpu.vector_store %arg15[%c96_87, %c0_88], %147 {strides = array<i32>} : memref<144x288xbf16, #tpu.memory_space<vmem>>, vector<16x288xbf16>,
    %c0_89 = arith.constant 0 : index
    %c140_90 = arith.constant 140 : index
    %149 = vector.load %arg16[%c0_89, %c140_90] : memref<16x544xbf16, #tpu.memory_space<vmem>>, vector<16x288xbf16>
    %150 = vector.extract_strided_slice %34 {offsets = [7, 0], sizes = [1, 288], strides = [1, 1]} : vector<9x288xbf16> to vector<1x288xbf16>
    %151 = vector.broadcast %150 : vector<1x288xbf16> to vector<16x288xbf16>
    %152 = arith.mulf %149, %151 : vector<16x288xbf16>
    %c112_91 = arith.constant 112 : index
    %c0_92 = arith.constant 0 : index
    %153 = vector.load %arg15[%c112_91, %c0_92] : memref<144x288xbf16, #tpu.memory_space<vmem>>, vector<16x288xbf16>
    tpu.vector_store %arg15[%c112_91, %c0_92], %152 {strides = array<i32>} : memref<144x288xbf16, #tpu.memory_space<vmem>>, vector<16x288xbf16>,
    %c0_93 = arith.constant 0 : index
    %c141_94 = arith.constant 141 : index
    %154 = vector.load %arg16[%c0_93, %c141_94] : memref<16x544xbf16, #tpu.memory_space<vmem>>, vector<16x288xbf16>
    %155 = vector.extract_strided_slice %34 {offsets = [8, 0], sizes = [1, 288], strides = [1, 1]} : vector<9x288xbf16> to vector<1x288xbf16>
    %156 = vector.broadcast %155 : vector<1x288xbf16> to vector<16x288xbf16>
    %157 = arith.mulf %154, %156 : vector<16x288xbf16>
    %c128_95 = arith.constant 128 : index
    %c0_96 = arith.constant 0 : index
    %158 = vector.load %arg15[%c128_95, %c0_96] : memref<144x288xbf16, #tpu.memory_space<vmem>>, vector<16x288xbf16>
    tpu.vector_store %arg15[%c128_95, %c0_96], %157 {strides = array<i32>} : memref<144x288xbf16, #tpu.memory_space<vmem>>, vector<16x288xbf16>,
    %c0_97 = arith.constant 0 : index
    %c0_98 = arith.constant 0 : index
    %159 = vector.load %arg7[%c0_97, %c0_98] : memref<16x144xbf16, #tpu.memory_space<vmem>>, vector<16x144xbf16>
    %c0_99 = arith.constant 0 : index
    %c0_100 = arith.constant 0 : index
    %160 = vector.load %arg15[%c0_99, %c0_100] : memref<144x288xbf16, #tpu.memory_space<vmem>>, vector<144x288xbf16>
    %cst_101 = arith.constant dense<0.000000e+00> : vector<16x288xf32>
    %161 = tpu.matmul %159, %160, %cst_101 {dimension_numbers = #tpu.dot_dimension_numbers<[1], [0], [0], [1], [0, 0, 1, 1], [], []>} : vector<16x144xbf16>, vector<144x288xbf16>, vector<16x288xf32> -> vector<16x288xf32>
    %c0_102 = arith.constant 0 : index
    %c0_103 = arith.constant 0 : index
    %162 = vector.load %arg8[%c0_102, %c0_103] : memref<16x1xf32, #tpu.memory_space<vmem>>, vector<16x1xf32>
    %c0_104 = arith.constant 0 : index
    %c0_105 = arith.constant 0 : index
    %163 = vector.load %arg9[%c0_104, %c0_105] : memref<16x1xf32, #tpu.memory_space<vmem>>, vector<16x1xf32>
    %cst_106 = arith.constant dense<0.000000e+00> : vector<16xf32>
    %164 = vector.multi_reduction <add>, %161, %cst_106 [1] : vector<16x288xf32> to vector<16xf32>
    %165 = vector.shape_cast %164 : vector<16xf32> to vector<16x1xf32>
    %cst_107 = arith.constant 0.00347222225 : f32
    %166 = vector.broadcast %cst_107 : f32 to vector<16x1xf32>
    %167 = arith.mulf %165, %166 : vector<16x1xf32>
    %168 = vector.broadcast %167 : vector<16x1xf32> to vector<16x288xf32>
    %169 = arith.subf %161, %168 : vector<16x288xf32>
    %170 = arith.mulf %169, %169 : vector<16x288xf32>
    %cst_108 = arith.constant dense<0.000000e+00> : vector<16xf32>
    %171 = vector.multi_reduction <add>, %170, %cst_108 [1] : vector<16x288xf32> to vector<16xf32>
    %172 = vector.shape_cast %171 : vector<16xf32> to vector<16x1xf32>
    %cst_109 = arith.constant 0.00347222225 : f32
    %173 = vector.broadcast %cst_109 : f32 to vector<16x1xf32>
    %174 = arith.mulf %172, %173 : vector<16x1xf32>
    %cst_110 = arith.constant 1.000000e-03 : f32
    %175 = vector.broadcast %cst_110 : f32 to vector<16x1xf32>
    %176 = arith.addf %174, %175 : vector<16x1xf32>
    %177 = math.rsqrt %176 : vector<16x1xf32>
    %178 = vector.broadcast %177 : vector<16x1xf32> to vector<16x288xf32>
    %179 = arith.mulf %169, %178 : vector<16x288xf32>
    %180 = vector.broadcast %162 : vector<16x1xf32> to vector<16x288xf32>
    %181 = arith.mulf %179, %180 : vector<16x288xf32>
    %182 = vector.broadcast %163 : vector<16x1xf32> to vector<16x288xf32>
    %183 = arith.addf %181, %182 : vector<16x288xf32>
    %c0_111 = arith.constant 0 : index
    %c0_112 = arith.constant 0 : index
    %184 = vector.load %arg11[%c0_111, %c0_112] : memref<288x16xf32, #tpu.memory_space<vmem>>, vector<288x16xf32>
    %cst_113 = arith.constant dense<0.000000e+00> : vector<16x16xf32>
    %185 = tpu.matmul %183, %184, %cst_113 {dimension_numbers = #tpu.dot_dimension_numbers<[1], [0], [0], [1], [0, 0, 1, 1], [], []>} : vector<16x288xf32>, vector<288x16xf32>, vector<16x16xf32> -> vector<16x16xf32>
    %c0_114 = arith.constant 0 : index
    %c0_115 = arith.constant 0 : index
    %186 = vector.load %arg12[%c0_114, %c0_115] : memref<16x16xf32, #tpu.memory_space<vmem>>, vector<16x16xf32>
    %187 = arith.mulf %185, %186 : vector<16x16xf32>
    %cst_116 = arith.constant dense<0.000000e+00> : vector<16xf32>
    %188 = vector.multi_reduction <add>, %187, %cst_116 [0] : vector<16x16xf32> to vector<16xf32>
    %189 = vector.shape_cast %188 : vector<16xf32> to vector<1x16xf32>
    %c0_117 = arith.constant 0 : index
    %c0_118 = arith.constant 0 : index
    %190 = vector.load %arg13[%c0_117, %c0_118] : memref<1x16xf32, #tpu.memory_space<vmem>>, vector<1x16xf32>
    %191 = arith.addf %189, %190 : vector<1x16xf32>
    %cst_119 = arith.constant 2.000000e+01 : f32
    %192 = vector.broadcast %cst_119 : f32 to vector<1x16xf32>
    %193 = arith.cmpf ogt, %191, %192 : vector<1x16xf32>
    %cst_120 = arith.constant 2.000000e+01 : f32
    %194 = vector.broadcast %cst_120 : f32 to vector<1x16xf32>
    %195 = arith.minimumf %191, %194 : vector<1x16xf32>
    %196 = math.exp %195 : vector<1x16xf32>
    %cst_121 = arith.constant 1.000000e+00 : f32
    %197 = vector.broadcast %cst_121 : f32 to vector<1x16xf32>
    %198 = arith.addf %197, %196 : vector<1x16xf32>
    %199 = math.log %198 : vector<1x16xf32>
    %200 = arith.select %193, %191, %199 : vector<1x16xi1>, vector<1x16xf32>
    %c0_122 = arith.constant 0 : index
    %c0_123 = arith.constant 0 : index
    %201 = vector.load %arg14[%c0_122, %c0_123] : memref<1x16xf32, #tpu.memory_space<vmem>>, vector<1x16xf32>
    tpu.vector_store %arg14[%c0_122, %c0_123], %200 {strides = array<i32>} : memref<1x16xf32, #tpu.memory_space<vmem>>, vector<1x16xf32>,
    return
  }
}

</mosaic_0001>

<llo_original>
// kernel: _lambda_.1
$region0: #{_lambda_.1}
  #allocation0 [shape = 'u32[]', space=smem, size = 0x4, offset = 0x4, fixed_abs, tag = 'smem constant byte address 0x4 - core index']
  #allocation1 [shape = 'u32[144,128]{1,0:T(1,128)}', space=vmem, size = 0x12000, scoped, tag = 'internal scratch']
  #allocation2 [shape = 'bf16[144,288]{1,0:T(16,128)(2,1)}', space=vmem, size = 0x1b000, scoped, tag = 'scratch operand']
  #allocation3 [shape = 'bf16[16,544]{1,0:T(16,128)(2,1)}', space=vmem, size = 0x5000, scoped, tag = 'scratch operand']
  %s0 = inlined_call_operand.vmem [shape: bf16[25,288], index: 0, kind: input, shape index: {}]
  %s1 = inlined_call_operand.vmem [shape: bf16[16,25], index: 1, kind: input, shape index: {}]
  %s2 = inlined_call_operand.vmem [shape: f32[16,1], index: 2, kind: input, shape index: {}]
  %s3 = inlined_call_operand.vmem [shape: f32[16,1], index: 3, kind: input, shape index: {}]
  %s4 = inlined_call_operand.vmem [shape: bf16[16,144], index: 4, kind: input, shape index: {}]
  %s5 = inlined_call_operand.vmem [shape: f32[16,1], index: 5, kind: input, shape index: {}]
  %s6 = inlined_call_operand.vmem [shape: f32[16,1], index: 6, kind: input, shape index: {}]
  %s7 = inlined_call_operand.vmem [shape: bf16[16,144], index: 7, kind: input, shape index: {}]
  %s8 = inlined_call_operand.vmem [shape: f32[16,1], index: 8, kind: input, shape index: {}]
  %s9 = inlined_call_operand.vmem [shape: f32[16,1], index: 9, kind: input, shape index: {}]
  %s10 = inlined_call_operand.vmem [shape: bf16[9,288], index: 10, kind: input, shape index: {}]
  %s11 = inlined_call_operand.vmem [shape: f32[288,16], index: 11, kind: input, shape index: {}]
  %s12 = inlined_call_operand.vmem [shape: f32[16,16], index: 12, kind: input, shape index: {}]
  %s13 = inlined_call_operand.vmem [shape: f32[1,16], index: 13, kind: input, shape index: {}]
  %s14 = inlined_call_operand.vmem [shape: f32[1,16], index: 14, kind: output, shape index: {}]
  %s15 = sld [smem:[#allocation0]]
  $region66: #{_lambda_.1} parent=0
    _
  %s17 = ssub.s32 1, %s15
  %s18 = scalar_select 0, %s17, %s15
  // Predicated region
  $region2: #{_lambda_.1} parent=0 // pred_check
    _
  $region3: #{_lambda_.1} parent=0 // pred_check_branch
    %20 = sbr.rel (0) target = $region5
  $region4: #{_lambda_.1} parent=0 // pred_region
    _
  $region5: #{_lambda_.1} parent=0 // pred_fallthru
    _
  // Predicated region
  $region6: #{_lambda_.1} parent=0 // pred_check
    _
  $region7: #{_lambda_.1} parent=0 // pred_check_branch
    %22 = sbr.rel (0) target = $region9
  $region8: #{_lambda_.1} parent=0 // pred_region
    _
  $region9: #{_lambda_.1} parent=0 // pred_fallthru
    _
  // Predicated region
  $region10: #{_lambda_.1} parent=0 // pred_check
    _
  $region11: #{_lambda_.1} parent=0 // pred_check_branch
    %24 = sbr.rel (0) target = $region13
  $region12: #{_lambda_.1} parent=0 // pred_region
    _
  $region13: #{_lambda_.1} parent=0 // pred_fallthru
    _
  // Predicated region
  $region14: #{_lambda_.1} parent=0 // pred_check
    _
  $region15: #{_lambda_.1} parent=0 // pred_check_branch
    %26 = sbr.rel (0) target = $region17
  $region16: #{_lambda_.1} parent=0 // pred_region
    _
  $region17: #{_lambda_.1} parent=0 // pred_fallthru
    _
  // Predicated region
  $region18: #{_lambda_.1} parent=0 // pred_check
    _
  $region19: #{_lambda_.1} parent=0 // pred_check_branch
    %28 = sbr.rel (0) target = $region21
  $region20: #{_lambda_.1} parent=0 // pred_region
    _
  $region21: #{_lambda_.1} parent=0 // pred_fallthru
    _
  // Predicated region
  $region22: #{_lambda_.1} parent=0 // pred_check
    _
  $region23: #{_lambda_.1} parent=0 // pred_check_branch
    %30 = sbr.rel (0) target = $region25
  $region24: #{_lambda_.1} parent=0 // pred_region
    _
  $region25: #{_lambda_.1} parent=0 // pred_fallthru
    _
  // Predicated region
  $region26: #{_lambda_.1} parent=0 // pred_check
    _
  $region27: #{_lambda_.1} parent=0 // pred_check_branch
    %32 = sbr.rel (0) target = $region29
  $region28: #{_lambda_.1} parent=0 // pred_region
    _
  $region29: #{_lambda_.1} parent=0 // pred_fallthru
    _
  // Predicated region
  $region30: #{_lambda_.1} parent=0 // pred_check
    _
  $region31: #{_lambda_.1} parent=0 // pred_check_branch
    %34 = sbr.rel (0) target = $region33
  $region32: #{_lambda_.1} parent=0 // pred_region
    _
  $region33: #{_lambda_.1} parent=0 // pred_fallthru
    _
  // Predicated region
  $region34: #{_lambda_.1} parent=0 // pred_check
    _
  $region35: #{_lambda_.1} parent=0 // pred_check_branch
    %36 = sbr.rel (0) target = $region37
  $region36: #{_lambda_.1} parent=0 // pred_region
    _
  $region37: #{_lambda_.1} parent=0 // pred_fallthru
    _
  // Predicated region
  $region38: #{_lambda_.1} parent=0 // pred_check
    _
  $region39: #{_lambda_.1} parent=0 // pred_check_branch
    %38 = sbr.rel (0) target = $region41
  $region40: #{_lambda_.1} parent=0 // pred_region
    _
  $region41: #{_lambda_.1} parent=0 // pred_fallthru
    _
  // Predicated region
  $region42: #{_lambda_.1} parent=0 // pred_check
    _
  $region43: #{_lambda_.1} parent=0 // pred_check_branch
    %40 = sbr.rel (0) target = $region45
  $region44: #{_lambda_.1} parent=0 // pred_region
    _
  $region45: #{_lambda_.1} parent=0 // pred_fallthru
    _
  // Predicated region
  $region46: #{_lambda_.1} parent=0 // pred_check
    _
  $region47: #{_lambda_.1} parent=0 // pred_check_branch
    %42 = sbr.rel (0) target = $region49
  $region48: #{_lambda_.1} parent=0 // pred_region
    _
  $region49: #{_lambda_.1} parent=0 // pred_fallthru
    _
  // Predicated region
  $region50: #{_lambda_.1} parent=0 // pred_check
    _
  $region51: #{_lambda_.1} parent=0 // pred_check_branch
    %44 = sbr.rel (0) target = $region53
  $region52: #{_lambda_.1} parent=0 // pred_region
    _
  $region53: #{_lambda_.1} parent=0 // pred_fallthru
    _
  // Predicated region
  $region54: #{_lambda_.1} parent=0 // pred_check
    _
  $region55: #{_lambda_.1} parent=0 // pred_check_branch
    %46 = sbr.rel (0) target = $region57
  $region56: #{_lambda_.1} parent=0 // pred_region
    _
  $region57: #{_lambda_.1} parent=0 // pred_fallthru
    _
  %v48 = vld [vmem:[%s1] sm:$0xf]
  %v49 = vld [vmem:[%s1 + $0x4] sm:$0xf]
  %v50 = vld [vmem:[%s0] sm:$0xff]
  %v51 = vld [vmem:[%s0 + $0x8] sm:$0xf]
  %v52 = vld [vmem:[%s0 + $0xc] sm:$0xff]
  %v53 = vld [vmem:[%s0 + $0x14] sm:$0xf]
  %v54 = vld [vmem:[%s0 + $0x18] sm:$0xff]
  %v55 = vld [vmem:[%s0 + $0x20] sm:$0xf]
  %v56 = vld [vmem:[%s0 + $0x24] sm:$0x11]
  %v57 = vld [vmem:[%s0 + $0x2c] sm:$0x1]
  %v60 = vunpack.c.l.b16 %v48
  %v61 = vunpack.c.l.b16 %v49
  %v62 = vpack.c.b16 %v61, %v60
  %v71 = vunpack.c.l.b16 %v50
  %v72 = vunpack.c.h.b16 %v50
  %v73 = vunpack.c.l.b16 %v51
  %v74 = vunpack.c.l.b16 %v52
  %v75 = vunpack.c.h.b16 %v52
  %v76 = vunpack.c.l.b16 %v53
  %v77 = vunpack.c.l.b16 %v54
  %v78 = vunpack.c.h.b16 %v54
  %v79 = vunpack.c.l.b16 %v55
  %v80 = vunpack.c.l.b16 %v56
  %v81 = vunpack.c.h.b16 %v56
  %v82 = vunpack.c.l.b16 %v57
  %v83 = vpack.c.b16 %v74, %v71
  %v84 = vpack.c.b16 %v75, %v72
  %v85 = vpack.c.b16 %v76, %v73
  %v86 = vpack.c.b16 %v80, %v77
  %v87 = vpack.c.b16 %v81, %v78
  %v88 = vpack.c.b16 %v82, %v79
  %vm92 = vcmask 203776
  %v94 = vsel %vm92, %v62, 0
  %vm96 = vcmask 1043456
  %vm97 = vcmask 1044480
  %v98 = vsel %vm96, 4294967295, 65535
  %v99 = vsel %vm97, %v98, 0
  %v101 = vand.u32 %v86, %v99
  %v104 = vand.u32 %v87, %v99
  %v107 = vand.u32 %v88, %v99
  %109 = vmatprep.subr.bf16.mxu0 %v84
  %110 = vmatpush1.bf16.msra.mxu0 %v83
  %111 = vmatprep.subr.bf16.mxu0 %v104
  %112 = vmatpush1.bf16.msra.mxu0 %v101
  %113 = vmatprep.subr.bf16.mxu0 0
  %114 = vmatpush1.bf16.msra.mxu0 0
  %115 = vmatprep.subr.bf16.mxu0 0
  %116 = vmatpush1.bf16.msra.mxu0 0
  %117 = vmatprep.subr.bf16.mxu0 0
  %118 = vmatpush1.bf16.msra.mxu0 0
  %119 = vmatprep.subr.bf16.mxu0 0
  %120 = vmatpush1.bf16.msra.mxu0 0
  %121 = vmatprep.subr.bf16.mxu0 0
  %122 = vmatpush1.bf16.msra.mxu0 0
  %123 = vmatprep.subr.bf16.mxu0 0
  %124 = vmatpush1.bf16.msra.mxu0 0
  %125 = vmatprep.subr.bf16.mxu0 0
  %126 = vmatpush1.bf16.msra.mxu0 0
  %127 = vmatprep.subr.bf16.mxu0 0
  %128 = vmatpush1.bf16.msra.mxu0 0
  %129 = vmatprep.subr.bf16.mxu0 0
  %130 = vmatpush1.bf16.msra.mxu0 0
  %131 = vmatprep.subr.bf16.mxu0 0
  %132 = vmatpush1.bf16.msra.mxu0 0
  %133 = vmatprep.subr.bf16.mxu0 0
  %134 = vmatpush1.bf16.msra.mxu0 0
  %135 = vmatprep.subr.bf16.mxu0 0
  %136 = vmatpush1.bf16.msra.mxu0 0
  %137 = vmatprep.subr.bf16.mxu0 0
  %138 = vmatpush1.bf16.msra.mxu0 0
  %139 = vmatprep.subr.bf16.mxu0 0
  %140 = vmatpush1.bf16.msra.mxu0 0
  %141 = vmatprep.mubr.bf16.mxu0 0
  %142 = vmatmul.mubr.bf16.gmra.mrb[0].mxu0 %v94
  %v143 = vpop.f32.mrb[0].mxu0
  %v144 = vadd.f32 0.0, %v143
  %v145 = vpop.f32.mrb[0].mxu0
  %v146 = vadd.f32 0.0, %v145
  %v147 = vpop.f32.mrb[0].mxu0
  %v148 = vadd.f32 0.0, %v147
  %v149 = vpop.f32.mrb[0].mxu0
  %v150 = vadd.f32 0.0, %v149
  %151 = vdwg.mxu0
  %152 = vmatprep.subr.bf16.mxu0 0
  %153 = vmatpush1.bf16.msra.mxu0 %v85
  %154 = vmatprep.subr.bf16.mxu0 0
  %155 = vmatpush1.bf16.msra.mxu0 %v107
  %156 = vmatprep.subr.bf16.mxu0 0
  %157 = vmatpush1.bf16.msra.mxu0 0
  %158 = vmatprep.subr.bf16.mxu0 0
  %159 = vmatpush1.bf16.msra.mxu0 0
  %160 = vmatprep.subr.bf16.mxu0 0
  %161 = vmatpush1.bf16.msra.mxu0 0
  %162 = vmatprep.subr.bf16.mxu0 0
  %163 = vmatpush1.bf16.msra.mxu0 0
  %164 = vmatprep.subr.bf16.mxu0 0
  %165 = vmatpush1.bf16.msra.mxu0 0
  %166 = vmatprep.subr.bf16.mxu0 0
  %167 = vmatpush1.bf16.msra.mxu0 0
  %168 = vmatprep.subr.bf16.mxu0 0
  %169 = vmatpush1.bf16.msra.mxu0 0
  %170 = vmatprep.subr.bf16.mxu0 0
  %171 = vmatpush1.bf16.msra.mxu0 0
  %172 = vmatprep.subr.bf16.mxu0 0
  %173 = vmatpush1.bf16.msra.mxu0 0
  %174 = vmatprep.subr.bf16.mxu0 0
  %175 = vmatpush1.bf16.msra.mxu0 0
  %176 = vmatprep.subr.bf16.mxu0 0
  %177 = vmatpush1.bf16.msra.mxu0 0
  %178 = vmatprep.subr.bf16.mxu0 0
  %179 = vmatpush1.bf16.msra.mxu0 0
  %180 = vmatprep.subr.bf16.mxu0 0
  %181 = vmatpush1.bf16.msra.mxu0 0
  %182 = vmatprep.subr.bf16.mxu0 0
  %183 = vmatpush1.bf16.msra.mxu0 0
  %184 = vmatprep.mubr.bf16.mxu0 0
  %185 = vmatmul.mubr.bf16.gmra.mrb[0].mxu0 %v94
  %v186 = vpop.f32.mrb[0].mxu0
  %v187 = vadd.f32 0.0, %v186
  %v188 = vpop.f32.mrb[0].mxu0
  %v189 = vpop.f32.mrb[0].mxu0
  %v190 = vadd.f32 0.0, %v189
  %v191 = vpop.f32.mrb[0].mxu0
  %192 = vdwg.mxu0
  %v193 = vld [vmem:[%s2] sm:$0xff]
  %v194 = vld [vmem:[%s2 + $0x8] sm:$0xff]
  %v195 = vld [vmem:[%s3] sm:$0xff]
  %v196 = vld [vmem:[%s3 + $0x8] sm:$0xff]
  %v197 = vadd.f32 %v144, %v146
  %vm198 = vcmask 261120
  %v199 = vsel %vm198, %v187, 0.0
  %v200 = vadd.f32 %v197, %v199
  %201 = vadd.xlane.f32.xlu0 %v200
  %v202 = vpop.xlane.xlu0 %201
  %v203 = vadd.f32 %v148, %v150
  %v204 = vsel %vm198, %v190, 0.0
  %v205 = vadd.f32 %v203, %v204
  %206 = vadd.xlane.f32.xlu0 %v205
  %v207 = vpop.xlane.xlu0 %206
  %v208 = vmul.f32 %v202, 0.0034722222
  %v209 = vmul.f32 %v207, 0.0034722222
  %v210 = vsub.f32 %v144, %v208
  %v211 = vsub.f32 %v146, %v208
  %v212 = vsub.f32 %v187, %v208
  %v213 = vsub.f32 %v148, %v209
  %v214 = vsub.f32 %v150, %v209
  %v215 = vsub.f32 %v190, %v209
  %v216 = vmul.f32 %v210, %v210
  %v217 = vmul.f32 %v211, %v211
  %v218 = vmul.f32 %v212, %v212
  %v219 = vmul.f32 %v213, %v213
  %v220 = vmul.f32 %v214, %v214
  %v221 = vmul.f32 %v215, %v215
  %v222 = vadd.f32 %v216, %v217
  %v223 = vsel %vm198, %v218, 0.0
  %v224 = vadd.f32 %v222, %v223
  %225 = vadd.xlane.f32.xlu0 %v224
  %v226 = vpop.xlane.xlu0 %225
  %v227 = vadd.f32 %v219, %v220
  %v228 = vsel %vm198, %v221, 0.0
  %v229 = vadd.f32 %v227, %v228
  %230 = vadd.xlane.f32.xlu0 %v229
  %v231 = vpop.xlane.xlu0 %230
  %v232 = vmul.f32 %v226, 0.0034722222
  %v233 = vmul.f32 %v231, 0.0034722222
  %v234 = vadd.f32 %v232, 0.001
  %v235 = vadd.f32 %v233, 0.001
  %v236 = vrsqrt.pop %v234
  %v237 = vrsqrt.pop %v235
  %v238 = vmul.f32 %v210, %v236
  %v239 = vmul.f32 %v211, %v236
  %v240 = vmul.f32 %v212, %v236
  %v241 = vmul.f32 %v213, %v237
  %v242 = vmul.f32 %v214, %v237
  %v243 = vmul.f32 %v215, %v237
  %245 = vset.pattern.permute.xlu0 0
  %246 = vperm.xlu0 %245, %v193
  %v247 = vpop.permute.xlu0 %246
  %250 = vset.pattern.permute.xlu0 0
  %251 = vperm.xlu0 %250, %v194
  %v252 = vpop.permute.xlu0 %251
  %v254 = vmul.f32 %v238, %v247
  %v255 = vmul.f32 %v239, %v247
  %v256 = vmul.f32 %v240, %v247
  %v257 = vmul.f32 %v241, %v252
  %v258 = vmul.f32 %v242, %v252
  %v259 = vmul.f32 %v243, %v252
  %261 = vset.pattern.permute.xlu0 0
  %262 = vperm.xlu0 %261, %v195
  %v263 = vpop.permute.xlu0 %262
  %266 = vset.pattern.permute.xlu0 0
  %267 = vperm.xlu0 %266, %v196
  %v268 = vpop.permute.xlu0 %267
  %v270 = vadd.f32 %v254, %v263
  %v271 = vadd.f32 %v255, %v263
  %v272 = vadd.f32 %v256, %v263
  %v273 = vadd.f32 %v257, %v268
  %v274 = vadd.f32 %v258, %v268
  %v275 = vadd.f32 %v259, %v268
  %vm276 = vcmp.gt.f32.partialorder %v270, 20.0
  %vm277 = vcmp.gt.f32.partialorder %v271, 20.0
  %vm278 = vcmp.gt.f32.partialorder %v272, 20.0
  %vm279 = vcmp.gt.f32.partialorder %v273, 20.0
  %vm280 = vcmp.gt.f32.partialorder %v274, 20.0
  %vm281 = vcmp.gt.f32.partialorder %v275, 20.0
  %v282 = vmin.f32 %v270, 20.0
  %v283 = vmin.f32 %v271, 20.0
  %v284 = vmin.f32 %v272, 20.0
  %v285 = vmin.f32 %v273, 20.0
  %v286 = vmin.f32 %v274, 20.0
  %v287 = vmin.f32 %v275, 20.0
  %v288 = vmul.f32 %v282, 1.442695
  %v289 = vpow.pop %v288
  %v290 = vmul.f32 %v283, 1.442695
  %v291 = vpow.pop %v290
  %v292 = vmul.f32 %v284, 1.442695
  %v293 = vpow.pop %v292
  %v294 = vmul.f32 %v285, 1.442695
  %v295 = vpow.pop %v294
  %v296 = vmul.f32 %v286, 1.442695
  %v297 = vpow.pop %v296
  %v298 = vmul.f32 %v287, 1.442695
  %v299 = vpow.pop %v298
  %v300 = vadd.f32 %v289, 1.0
  %v301 = vadd.f32 %v291, 1.0
  %v302 = vadd.f32 %v293, 1.0
  %v303 = vadd.f32 %v295, 1.0
  %v304 = vadd.f32 %v297, 1.0
  %v305 = vadd.f32 %v299, 1.0
  %v306 = vlog2.pop %v300
  %v307 = vmul.f32 %v306, 0.6931472
  %v308 = vlog2.pop %v301
  %v309 = vmul.f32 %v308, 0.6931472
  %v310 = vlog2.pop %v302
  %v311 = vmul.f32 %v310, 0.6931472
  %v312 = vlog2.pop %v303
  %v313 = vmul.f32 %v312, 0.6931472
  %v314 = vlog2.pop %v304
  %v315 = vmul.f32 %v314, 0.6931472
  %v316 = vlog2.pop %v305
  %v317 = vmul.f32 %v316, 0.6931472
  %v318 = vsel %vm276, %v270, %v307
  %v319 = vsel %vm277, %v271, %v309
  %v320 = vsel %vm278, %v272, %v311
  %v321 = vsel %vm279, %v273, %v313
  %v322 = vsel %vm280, %v274, %v315
  %v323 = vsel %vm281, %v275, %v317
  %v324 = vld [vmem:[%s10] sm:$0xff]
  %v325 = vld [vmem:[%s10 + $0x8] sm:$0xf]
  %v326 = vld [vmem:[%s10 + $0xc] sm:$0x11]
  %v327 = vld [vmem:[%s10 + $0x14] sm:$0x1]
  %328 = vst [vmem:[#allocation3] sm:$0xff] 0
  %329 = vst [vmem:[#allocation3 + $0x8] sm:$0xff] 0
  %330 = vst [vmem:[#allocation3 + $0x10] sm:$0xff] 0
  %331 = vst [vmem:[#allocation3 + $0x18] sm:$0xff] 0
  %332 = vst.msk [vmem:[#allocation3 + $0x20] sm:$0xff] %vm198, 0
  %v333 = vpack.c.bf16 %v321, %v318
  %v334 = vpack.c.bf16 %v322, %v319
  %v335 = vpack.c.bf16 %v323, %v320
  %336 = vst [vmem:[#allocation3 + $0x8] sm:$0xff] %v333
  %337 = vst [vmem:[#allocation3 + $0x10] sm:$0xff] %v334
  %338 = vst.msk [vmem:[#allocation3 + $0x18] sm:$0xff] %vm198, %v335
  %v339 = vld [vmem:[#allocation3] sm:$0xff]
  %v340 = vld [vmem:[#allocation3 + $0x8] sm:$0xff]
  %v341 = vld [vmem:[#allocation3 + $0x10] sm:$0xff]
  %v342 = vld [vmem:[#allocation3 + $0x18] sm:$0xff]
  %v345 = vunpack.c.l.b16 %v324
  %v346 = vunpack.c.h.b16 %v324
  %v347 = vunpack.c.l.b16 %v325
  %v348 = vpack.c.b16 %v345, %v345
  %v349 = vpack.c.b16 %v346, %v346
  %v350 = vpack.c.b16 %v347, %v347
  %v352 = vpack.i.b16 %v348, %v348
  %v354 = vlaneseq
  %v355 = vshrl.u32 %v354, 7
  %v356 = vsub.s32 0, %v355
  %v357 = vrot.slane %v352, %v356
  %v359 = vpack.i.b16 %v349, %v349
  %v361 = vlaneseq
  %v362 = vshrl.u32 %v361, 7
  %v363 = vsub.s32 0, %v362
  %v364 = vrot.slane %v359, %v363
  %v366 = vpack.i.b16 %v350, %v350
  %v368 = vlaneseq
  %v369 = vshrl.u32 %v368, 7
  %v370 = vsub.s32 0, %v369
  %v371 = vrot.slane %v366, %v370
  %375 = vrot.lane.b32.xlu0 %v357, 115
  %v376 = vpop.permute.xlu0 %375
  %377 = vrot.lane.b32.xlu0 %v364, 115
  %v378 = vpop.permute.xlu0 %377
  %379 = vrot.lane.b32.xlu0 %v371, 115
  %v380 = vpop.permute.xlu0 %379
  %vm381 = vcmask 941056
  %v382 = vsel %vm381, %v376, %v378
  %v383 = vsel %vm381, %v378, %v380
  %v388 = vmul.bf16 %v339, %v376
  %v389 = vmul.bf16 %v340, %v382
  %v390 = vmul.bf16 %v341, %v383
  %v391 = vmul.bf16 %v342, %v380
  %396 = vrot.lane.b32.xlu0 %v388, 13
  %v397 = vpop.permute.xlu0 %396
  %398 = vrot.lane.b32.xlu0 %v389, 13
  %v399 = vpop.permute.xlu0 %398
  %400 = vrot.lane.b32.xlu0 %v390, 13
  %v401 = vpop.permute.xlu0 %400
  %402 = vrot.lane.b32.xlu0 %v391, 13
  %v403 = vpop.permute.xlu0 %402
  %vm404 = vcmask 105472
  %v405 = vsel %vm404, %v397, %v399
  %v406 = vsel %vm404, %v399, %v401
  %v407 = vsel %vm404, %v401, %v403
  %411 = vst [vmem:[#allocation2] sm:$0xff] %v405
  %412 = vst [vmem:[#allocation2 + $0x8] sm:$0xff] %v406
  %413 = vst.msk [vmem:[#allocation2 + $0x10] sm:$0xff] %vm198, %v407
  %v414 = vld [vmem:[#allocation3] sm:$0xff]
  %v415 = vld [vmem:[#allocation3 + $0x8] sm:$0xff]
  %v416 = vld [vmem:[#allocation3 + $0x10] sm:$0xff]
  %v417 = vld [vmem:[#allocation3 + $0x18] sm:$0xff]
  %v418 = vshrl.u32 %v348, 16
  %v419 = vpack.i.b16 %v418, %v418
  %v421 = vlaneseq
  %v422 = vshrl.u32 %v421, 7
  %v423 = vsub.s32 0, %v422
  %v424 = vrot.slane %v419, %v423
  %v425 = vshrl.u32 %v349, 16
  %v426 = vpack.i.b16 %v425, %v425
  %v428 = vlaneseq
  %v429 = vshrl.u32 %v428, 7
  %v430 = vsub.s32 0, %v429
  %v431 = vrot.slane %v426, %v430
  %v432 = vshrl.u32 %v350, 16
  %v433 = vpack.i.b16 %v432, %v432
  %v435 = vlaneseq
  %v436 = vshrl.u32 %v435, 7
  %v437 = vsub.s32 0, %v436
  %v438 = vrot.slane %v433, %v437
  %442 = vrot.lane.b32.xlu0 %v424, 116
  %v443 = vpop.permute.xlu0 %442
  %444 = vrot.lane.b32.xlu0 %v431, 116
  %v445 = vpop.permute.xlu0 %444
  %446 = vrot.lane.b32.xlu0 %v438, 116
  %v447 = vpop.permute.xlu0 %446
  %vm448 = vcmask 949248
  %v449 = vsel %vm448, %v443, %v445
  %v450 = vsel %vm448, %v445, %v447
  %v455 = vmul.bf16 %v414, %v443
  %v456 = vmul.bf16 %v415, %v449
  %v457 = vmul.bf16 %v416, %v450
  %v458 = vmul.bf16 %v417, %v447
  %463 = vrot.lane.b32.xlu0 %v455, 12
  %v464 = vpop.permute.xlu0 %463
  %465 = vrot.lane.b32.xlu0 %v456, 12
  %v466 = vpop.permute.xlu0 %465
  %467 = vrot.lane.b32.xlu0 %v457, 12
  %v468 = vpop.permute.xlu0 %467
  %469 = vrot.lane.b32.xlu0 %v458, 12
  %v470 = vpop.permute.xlu0 %469
  %vm471 = vcmask 97280
  %v472 = vsel %vm471, %v464, %v466
  %v473 = vsel %vm471, %v466, %v468
  %v474 = vsel %vm471, %v468, %v470
  %478 = vst [vmem:[#allocation2 + $0x18] sm:$0xff] %v472
  %479 = vst [vmem:[#allocation2 + $0x20] sm:$0xff] %v473
  %480 = vst.msk [vmem:[#allocation2 + $0x28] sm:$0xff] %vm198, %v474
  %v481 = vld [vmem:[#allocation3] sm:$0xff]
  %v482 = vld [vmem:[#allocation3 + $0x8] sm:$0xff]
  %v483 = vld [vmem:[#allocation3 + $0x10] sm:$0xff]
  %v484 = vld [vmem:[#allocation3 + $0x18] sm:$0xff]
  %v485 = vlaneseq
  %v486 = vshrl.u32 %v485, 7
  %v487 = vsub.s32 1, %v486
  %v488 = vrot.slane %v352, %v487
  %v489 = vlaneseq
  %v490 = vshrl.u32 %v489, 7
  %v491 = vsub.s32 1, %v490
  %v492 = vrot.slane %v359, %v491
  %v493 = vlaneseq
  %v494 = vshrl.u32 %v493, 7
  %v495 = vsub.s32 1, %v494
  %v496 = vrot.slane %v366, %v495
  %500 = vrot.lane.b32.xlu0 %v488, 117
  %v501 = vpop.permute.xlu0 %500
  %502 = vrot.lane.b32.xlu0 %v492, 117
  %v503 = vpop.permute.xlu0 %502
  %504 = vrot.lane.b32.xlu0 %v496, 117
  %v505 = vpop.permute.xlu0 %504
  %vm506 = vcmask 957440
  %v507 = vsel %vm506, %v501, %v503
  %v508 = vsel %vm506, %v503, %v505
  %v513 = vmul.bf16 %v481, %v501
  %v514 = vmul.bf16 %v482, %v507
  %v515 = vmul.bf16 %v483, %v508
  %v516 = vmul.bf16 %v484, %v505
  %521 = vrot.lane.b32.xlu0 %v513, 11
  %v522 = vpop.permute.xlu0 %521
  %523 = vrot.lane.b32.xlu0 %v514, 11
  %v524 = vpop.permute.xlu0 %523
  %525 = vrot.lane.b32.xlu0 %v515, 11
  %v526 = vpop.permute.xlu0 %525
  %527 = vrot.lane.b32.xlu0 %v516, 11
  %v528 = vpop.permute.xlu0 %527
  %vm529 = vcmask 89088
  %v530 = vsel %vm529, %v522, %v524
  %v531 = vsel %vm529, %v524, %v526
  %v532 = vsel %vm529, %v526, %v528
  %536 = vst [vmem:[#allocation2 + $0x30] sm:$0xff] %v530
  %537 = vst [vmem:[#allocation2 + $0x38] sm:$0xff] %v531
  %538 = vst.msk [vmem:[#allocation2 + $0x40] sm:$0xff] %vm198, %v532
  %v539 = vld [vmem:[#allocation3] sm:$0xff]
  %v540 = vld [vmem:[#allocation3 + $0x8] sm:$0xff]
  %v541 = vld [vmem:[#allocation3 + $0x10] sm:$0xff]
  %v542 = vld [vmem:[#allocation3 + $0x18] sm:$0xff]
  %v543 = vlaneseq
  %v544 = vshrl.u32 %v543, 7
  %v545 = vsub.s32 1, %v544
  %v546 = vrot.slane %v419, %v545
  %v547 = vlaneseq
  %v548 = vshrl.u32 %v547, 7
  %v549 = vsub.s32 1, %v548
  %v550 = vrot.slane %v426, %v549
  %v551 = vlaneseq
  %v552 = vshrl.u32 %v551, 7
  %v553 = vsub.s32 1, %v552
  %v554 = vrot.slane %v433, %v553
  %558 = vrot.lane.b32.xlu0 %v546, 127
  %v559 = vpop.permute.xlu0 %558
  %560 = vrot.lane.b32.xlu0 %v550, 127
  %v561 = vpop.permute.xlu0 %560
  %562 = vrot.lane.b32.xlu0 %v554, 127
  %v563 = vpop.permute.xlu0 %562
  %vm564 = vcmask 1039360
  %v565 = vsel %vm564, %v559, %v561
  %v566 = vsel %vm564, %v561, %v563
  %v571 = vmul.bf16 %v539, %v559
  %v572 = vmul.bf16 %v540, %v565
  %v573 = vmul.bf16 %v541, %v566
  %v574 = vmul.bf16 %v542, %v563
  %579 = vrot.lane.b32.xlu0 %v571, 1
  %v580 = vpop.permute.xlu0 %579
  %581 = vrot.lane.b32.xlu0 %v572, 1
  %v582 = vpop.permute.xlu0 %581
  %583 = vrot.lane.b32.xlu0 %v573, 1
  %v584 = vpop.permute.xlu0 %583
  %585 = vrot.lane.b32.xlu0 %v574, 1
  %v586 = vpop.permute.xlu0 %585
  %vm587 = vcmask 7168
  %v588 = vsel %vm587, %v580, %v582
  %v589 = vsel %vm587, %v582, %v584
  %v590 = vsel %vm587, %v584, %v586
  %594 = vst [vmem:[#allocation2 + $0x48] sm:$0xff] %v588
  %595 = vst [vmem:[#allocation2 + $0x50] sm:$0xff] %v589
  %596 = vst.msk [vmem:[#allocation2 + $0x58] sm:$0xff] %vm198, %v590
  %v597 = vld [vmem:[#allocation3 + $0x8] sm:$0xff]
  %v598 = vld [vmem:[#allocation3 + $0x10] sm:$0xff]
  %v599 = vld [vmem:[#allocation3 + $0x18] sm:$0xff]
  %600 = vst [vmem:[#allocation2 + $0x60] sm:$0xff] %v597
  %601 = vst [vmem:[#allocation2 + $0x68] sm:$0xff] %v598
  %602 = vst.msk [vmem:[#allocation2 + $0x70] sm:$0xff] %vm198, %v599
  %v603 = vld [vmem:[#allocation3 + $0x8] sm:$0xff]
  %v604 = vld [vmem:[#allocation3 + $0x10] sm:$0xff]
  %v605 = vld [vmem:[#allocation3 + $0x18] sm:$0xff]
  %v606 = vlaneseq
  %v607 = vshrl.u32 %v606, 7
  %v608 = vsub.s32 2, %v607
  %v609 = vrot.slane %v419, %v608
  %v610 = vlaneseq
  %v611 = vshrl.u32 %v610, 7
  %v612 = vsub.s32 2, %v611
  %v613 = vrot.slane %v426, %v612
  %v614 = vlaneseq
  %v615 = vshrl.u32 %v614, 7
  %v616 = vsub.s32 2, %v615
  %v617 = vrot.slane %v433, %v616
  %621 = vrot.lane.b32.xlu0 %v609, 1
  %v622 = vpop.permute.xlu0 %621
  %623 = vrot.lane.b32.xlu0 %v613, 1
  %v624 = vpop.permute.xlu0 %623
  %625 = vrot.lane.b32.xlu0 %v617, 1
  %v626 = vpop.permute.xlu0 %625
  %v627 = vsel %vm587, %v622, %v624
  %v628 = vsel %vm587, %v624, %v626
  %v632 = vmul.bf16 %v603, %v622
  %v633 = vmul.bf16 %v604, %v627
  %v634 = vmul.bf16 %v605, %v628
  %638 = vrot.lane.b32.xlu0 %v632, 127
  %v639 = vpop.permute.xlu0 %638
  %640 = vrot.lane.b32.xlu0 %v633, 127
  %v641 = vpop.permute.xlu0 %640
  %642 = vrot.lane.b32.xlu0 %v634, 127
  %v643 = vpop.permute.xlu0 %642
  %v644 = vsel %vm564, %v639, %v641
  %v645 = vsel %vm564, %v641, %v643
  %649 = vst [vmem:[#allocation2 + $0x78] sm:$0xff] %v644
  %650 = vst [vmem:[#allocation2 + $0x80] sm:$0xff] %v645
  %651 = vst.msk [vmem:[#allocation2 + $0x88] sm:$0xff] %vm198, %v643
  %v652 = vld [vmem:[#allocation3 + $0x8] sm:$0xff]
  %v653 = vld [vmem:[#allocation3 + $0x10] sm:$0xff]
  %v654 = vld [vmem:[#allocation3 + $0x18] sm:$0xff]
  %v655 = vlaneseq
  %v656 = vshrl.u32 %v655, 7
  %v657 = vsub.s32 3, %v656
  %v658 = vrot.slane %v352, %v657
  %v659 = vlaneseq
  %v660 = vshrl.u32 %v659, 7
  %v661 = vsub.s32 3, %v660
  %v662 = vrot.slane %v359, %v661
  %v663 = vlaneseq
  %v664 = vshrl.u32 %v663, 7
  %v665 = vsub.s32 3, %v664
  %v666 = vrot.slane %v366, %v665
  %670 = vrot.lane.b32.xlu0 %v658, 11
  %v671 = vpop.permute.xlu0 %670
  %672 = vrot.lane.b32.xlu0 %v662, 11
  %v673 = vpop.permute.xlu0 %672
  %674 = vrot.lane.b32.xlu0 %v666, 11
  %v675 = vpop.permute.xlu0 %674
  %v676 = vsel %vm529, %v671, %v673
  %v677 = vsel %vm529, %v673, %v675
  %v681 = vmul.bf16 %v652, %v671
  %v682 = vmul.bf16 %v653, %v676
  %v683 = vmul.bf16 %v654, %v677
  %687 = vrot.lane.b32.xlu0 %v681, 117
  %v688 = vpop.permute.xlu0 %687
  %689 = vrot.lane.b32.xlu0 %v682, 117
  %v690 = vpop.permute.xlu0 %689
  %691 = vrot.lane.b32.xlu0 %v683, 117
  %v692 = vpop.permute.xlu0 %691
  %v693 = vsel %vm506, %v688, %v690
  %v694 = vsel %vm506, %v690, %v692
  %698 = vst [vmem:[#allocation2 + $0x90] sm:$0xff] %v693
  %699 = vst [vmem:[#allocation2 + $0x98] sm:$0xff] %v694
  %700 = vst.msk [vmem:[#allocation2 + $0xa0] sm:$0xff] %vm198, %v692
  %v701 = vld [vmem:[#allocation3 + $0x8] sm:$0xff]
  %v702 = vld [vmem:[#allocation3 + $0x10] sm:$0xff]
  %v703 = vld [vmem:[#allocation3 + $0x18] sm:$0xff]
  %v704 = vlaneseq
  %v705 = vshrl.u32 %v704, 7
  %v706 = vsub.s32 3, %v705
  %v707 = vrot.slane %v419, %v706
  %v708 = vlaneseq
  %v709 = vshrl.u32 %v708, 7
  %v710 = vsub.s32 3, %v709
  %v711 = vrot.slane %v426, %v710
  %v712 = vlaneseq
  %v713 = vshrl.u32 %v712, 7
  %v714 = vsub.s32 3, %v713
  %v715 = vrot.slane %v433, %v714
  %719 = vrot.lane.b32.xlu0 %v707, 12
  %v720 = vpop.permute.xlu0 %719
  %721 = vrot.lane.b32.xlu0 %v711, 12
  %v722 = vpop.permute.xlu0 %721
  %723 = vrot.lane.b32.xlu0 %v715, 12
  %v724 = vpop.permute.xlu0 %723
  %v725 = vsel %vm471, %v720, %v722
  %v726 = vsel %vm471, %v722, %v724
  %v730 = vmul.bf16 %v701, %v720
  %v731 = vmul.bf16 %v702, %v725
  %v732 = vmul.bf16 %v703, %v726
  %736 = vrot.lane.b32.xlu0 %v730, 116
  %v737 = vpop.permute.xlu0 %736
  %738 = vrot.lane.b32.xlu0 %v731, 116
  %v739 = vpop.permute.xlu0 %738
  %740 = vrot.lane.b32.xlu0 %v732, 116
  %v741 = vpop.permute.xlu0 %740
  %v742 = vsel %vm448, %v737, %v739
  %v743 = vsel %vm448, %v739, %v741
  %747 = vst [vmem:[#allocation2 + $0xa8] sm:$0xff] %v742
  %748 = vst [vmem:[#allocation2 + $0xb0] sm:$0xff] %v743
  %749 = vst.msk [vmem:[#allocation2 + $0xb8] sm:$0xff] %vm198, %v741
  %v750 = vld [vmem:[#allocation3 + $0x8] sm:$0xff]
  %v751 = vld [vmem:[#allocation3 + $0x10] sm:$0xff]
  %v752 = vld [vmem:[#allocation3 + $0x18] sm:$0xff]
  %v755 = vunpack.c.l.b16 %v326
  %v756 = vunpack.c.h.b16 %v326
  %v757 = vunpack.c.l.b16 %v327
  %v758 = vpack.c.b16 %v755, %v755
  %v759 = vpack.c.b16 %v756, %v756
  %v760 = vpack.c.b16 %v757, %v757
  %v762 = vpack.i.b16 %v758, %v758
  %v764 = vlaneseq
  %v765 = vshrl.u32 %v764, 7
  %v766 = vsub.s32 0, %v765
  %v767 = vrot.slane %v762, %v766
  %v769 = vpack.i.b16 %v759, %v759
  %v771 = vlaneseq
  %v772 = vshrl.u32 %v771, 7
  %v773 = vsub.s32 0, %v772
  %v774 = vrot.slane %v769, %v773
  %v776 = vpack.i.b16 %v760, %v760
  %v778 = vlaneseq
  %v779 = vshrl.u32 %v778, 7
  %v780 = vsub.s32 0, %v779
  %v781 = vrot.slane %v776, %v780
  %785 = vrot.lane.b32.xlu0 %v767, 13
  %v786 = vpop.permute.xlu0 %785
  %787 = vrot.lane.b32.xlu0 %v774, 13
  %v788 = vpop.permute.xlu0 %787
  %789 = vrot.lane.b32.xlu0 %v781, 13
  %v790 = vpop.permute.xlu0 %789
  %v791 = vsel %vm404, %v786, %v788
  %v792 = vsel %vm404, %v788, %v790
  %v796 = vmul.bf16 %v750, %v786
  %v797 = vmul.bf16 %v751, %v791
  %v798 = vmul.bf16 %v752, %v792
  %802 = vrot.lane.b32.xlu0 %v796, 115
  %v803 = vpop.permute.xlu0 %802
  %804 = vrot.lane.b32.xlu0 %v797, 115
  %v805 = vpop.permute.xlu0 %804
  %806 = vrot.lane.b32.xlu0 %v798, 115
  %v807 = vpop.permute.xlu0 %806
  %v808 = vsel %vm381, %v803, %v805
  %v809 = vsel %vm381, %v805, %v807
  %813 = vst [vmem:[#allocation2 + $0xc0] sm:$0xff] %v808
  %814 = vst [vmem:[#allocation2 + $0xc8] sm:$0xff] %v809
  %815 = vst.msk [vmem:[#allocation2 + $0xd0] sm:$0xff] %vm198, %v807
  %v816 = vld [vmem:[%s4] sm:$0xff]
  %v817 = vld [vmem:[%s4 + $0x8] sm:$0xff]
  %v818 = vld [vmem:[#allocation2] sm:$0xff]
  %v819 = vld [vmem:[#allocation2 + $0x8] sm:$0xff]
  %v820 = vld [vmem:[#allocation2 + $0x10] sm:$0xff]
  %v821 = vld [vmem:[#allocation2 + $0x18] sm:$0xff]
  %v822 = vld [vmem:[#allocation2 + $0x20] sm:$0xff]
  %v823 = vld [vmem:[#allocation2 + $0x28] sm:$0xff]
  %v824 = vld [vmem:[#allocation2 + $0x30] sm:$0xff]
  %v825 = vld [vmem:[#allocation2 + $0x38] sm:$0xff]
  %v826 = vld [vmem:[#allocation2 + $0x40] sm:$0xff]
  %v827 = vld [vmem:[#allocation2 + $0x48] sm:$0xff]
  %v828 = vld [vmem:[#allocation2 + $0x50] sm:$0xff]
  %v829 = vld [vmem:[#allocation2 + $0x58] sm:$0xff]
  %v830 = vld [vmem:[#allocation2 + $0x60] sm:$0xff]
  %v831 = vld [vmem:[#allocation2 + $0x68] sm:$0xff]
  %v832 = vld [vmem:[#allocation2 + $0x70] sm:$0xff]
  %v833 = vld [vmem:[#allocation2 + $0x78] sm:$0xff]
  %v834 = vld [vmem:[#allocation2 + $0x80] sm:$0xff]
  %v835 = vld [vmem:[#allocation2 + $0x88] sm:$0xff]
  %v836 = vld [vmem:[#allocation2 + $0x90] sm:$0xff]
  %v837 = vld [vmem:[#allocation2 + $0x98] sm:$0xff]
  %v838 = vld [vmem:[#allocation2 + $0xa0] sm:$0xff]
  %v839 = vld [vmem:[#allocation2 + $0xa8] sm:$0xff]
  %v840 = vld [vmem:[#allocation2 + $0xb0] sm:$0xff]
  %v841 = vld [vmem:[#allocation2 + $0xb8] sm:$0xff]
  %v842 = vld [vmem:[#allocation2 + $0xc0] sm:$0xff]
  %v843 = vld [vmem:[#allocation2 + $0xc8] sm:$0xff]
  %v844 = vld [vmem:[#allocation2 + $0xd0] sm:$0xff]
  %v847 = vunpack.c.l.b16 %v816
  %v848 = vunpack.c.h.b16 %v816
  %v849 = vunpack.c.l.b16 %v817
  %v850 = vunpack.c.h.b16 %v817
  %v851 = vpack.c.b16 %v849, %v847
  %v852 = vpack.c.b16 %v850, %v848
  %vm854 = vcmask 130048
  %v856 = vsel %vm854, %v852, 0
  %858 = vmatprep.subr.bf16.mxu0 %v819
  %859 = vmatpush1.bf16.msra.mxu0 %v818
  %860 = vmatprep.subr.bf16.mxu0 %v822
  %861 = vmatpush1.bf16.msra.mxu0 %v821
  %862 = vmatprep.subr.bf16.mxu0 %v825
  %863 = vmatpush1.bf16.msra.mxu0 %v824
  %864 = vmatprep.subr.bf16.mxu0 %v828
  %865 = vmatpush1.bf16.msra.mxu0 %v827
  %866 = vmatprep.subr.bf16.mxu0 %v831
  %867 = vmatpush1.bf16.msra.mxu0 %v830
  %868 = vmatprep.subr.bf16.mxu0 %v834
  %869 = vmatpush1.bf16.msra.mxu0 %v833
  %870 = vmatprep.subr.bf16.mxu0 %v837
  %871 = vmatpush1.bf16.msra.mxu0 %v836
  %872 = vmatprep.subr.bf16.mxu0 %v840
  %873 = vmatpush1.bf16.msra.mxu0 %v839
  %874 = vmatprep.subr.bf16.mxu0 %v843
  %875 = vmatpush1.bf16.msra.mxu0 %v842
  %876 = vmatprep.subr.bf16.mxu0 0
  %877 = vmatpush1.bf16.msra.mxu0 0
  %878 = vmatprep.subr.bf16.mxu0 0
  %879 = vmatpush1.bf16.msra.mxu0 0
  %880 = vmatprep.subr.bf16.mxu0 0
  %881 = vmatpush1.bf16.msra.mxu0 0
  %882 = vmatprep.subr.bf16.mxu0 0
  %883 = vmatpush1.bf16.msra.mxu0 0
  %884 = vmatprep.subr.bf16.mxu0 0
  %885 = vmatpush1.bf16.msra.mxu0 0
  %886 = vmatprep.subr.bf16.mxu0 0
  %887 = vmatpush1.bf16.msra.mxu0 0
  %888 = vmatprep.subr.bf16.mxu0 0
  %889 = vmatpush1.bf16.msra.mxu0 0
  %890 = vmatprep.mubr.bf16.mxu0 %v856
  %891 = vmatmul.mubr.bf16.gmra.mrb[0].mxu0 %v851
  %v892 = vpop.f32.mrb[0].mxu0
  %v893 = vadd.f32 0.0, %v892
  %v894 = vpop.f32.mrb[0].mxu0
  %v895 = vadd.f32 0.0, %v894
  %v896 = vpop.f32.mrb[0].mxu0
  %v897 = vadd.f32 0.0, %v896
  %v898 = vpop.f32.mrb[0].mxu0
  %v899 = vadd.f32 0.0, %v898
  %900 = vdwg.mxu0
  %901 = vmatprep.subr.bf16.mxu0 0
  %902 = vmatpush1.bf16.msra.mxu0 %v820
  %903 = vmatprep.subr.bf16.mxu0 0
  %904 = vmatpush1.bf16.msra.mxu0 %v823
  %905 = vmatprep.subr.bf16.mxu0 0
  %906 = vmatpush1.bf16.msra.mxu0 %v826
  %907 = vmatprep.subr.bf16.mxu0 0
  %908 = vmatpush1.bf16.msra.mxu0 %v829
  %909 = vmatprep.subr.bf16.mxu0 0
  %910 = vmatpush1.bf16.msra.mxu0 %v832
  %911 = vmatprep.subr.bf16.mxu0 0
  %912 = vmatpush1.bf16.msra.mxu0 %v835
  %913 = vmatprep.subr.bf16.mxu0 0
  %914 = vmatpush1.bf16.msra.mxu0 %v838
  %915 = vmatprep.subr.bf16.mxu0 0
  %916 = vmatpush1.bf16.msra.mxu0 %v841
  %917 = vmatprep.subr.bf16.mxu0 0
  %918 = vmatpush1.bf16.msra.mxu0 %v844
  %919 = vmatprep.subr.bf16.mxu0 0
  %920 = vmatpush1.bf16.msra.mxu0 0
  %921 = vmatprep.subr.bf16.mxu0 0
  %922 = vmatpush1.bf16.msra.mxu0 0
  %923 = vmatprep.subr.bf16.mxu0 0
  %924 = vmatpush1.bf16.msra.mxu0 0
  %925 = vmatprep.subr.bf16.mxu0 0
  %926 = vmatpush1.bf16.msra.mxu0 0
  %927 = vmatprep.subr.bf16.mxu0 0
  %928 = vmatpush1.bf16.msra.mxu0 0
  %929 = vmatprep.subr.bf16.mxu0 0
  %930 = vmatpush1.bf16.msra.mxu0 0
  %931 = vmatprep.subr.bf16.mxu0 0
  %932 = vmatpush1.bf16.msra.mxu0 0
  %933 = vmatprep.mubr.bf16.mxu0 %v856
  %934 = vmatmul.mubr.bf16.gmra.mrb[0].mxu0 %v851
  %v935 = vpop.f32.mrb[0].mxu0
  %v936 = vadd.f32 0.0, %v935
  %v937 = vpop.f32.mrb[0].mxu0
  %v938 = vpop.f32.mrb[0].mxu0
  %v939 = vadd.f32 0.0, %v938
  %v940 = vpop.f32.mrb[0].mxu0
  %941 = vdwg.mxu0
  %v942 = vld [vmem:[%s5] sm:$0xff]
  %v943 = vld [vmem:[%s5 + $0x8] sm:$0xff]
  %v944 = vld [vmem:[%s6] sm:$0xff]
  %v945 = vld [vmem:[%s6 + $0x8] sm:$0xff]
  %v946 = vadd.f32 %v893, %v895
  %v947 = vsel %vm198, %v936, 0.0
  %v948 = vadd.f32 %v946, %v947
  %949 = vadd.xlane.f32.xlu0 %v948
  %v950 = vpop.xlane.xlu0 %949
  %v951 = vadd.f32 %v897, %v899
  %v952 = vsel %vm198, %v939, 0.0
  %v953 = vadd.f32 %v951, %v952
  %954 = vadd.xlane.f32.xlu0 %v953
  %v955 = vpop.xlane.xlu0 %954
  %v956 = vmul.f32 %v950, 0.0034722222
  %v957 = vmul.f32 %v955, 0.0034722222
  %v958 = vsub.f32 %v893, %v956
  %v959 = vsub.f32 %v895, %v956
  %v960 = vsub.f32 %v936, %v956
  %v961 = vsub.f32 %v897, %v957
  %v962 = vsub.f32 %v899, %v957
  %v963 = vsub.f32 %v939, %v957
  %v964 = vmul.f32 %v958, %v958
  %v965 = vmul.f32 %v959, %v959
  %v966 = vmul.f32 %v960, %v960
  %v967 = vmul.f32 %v961, %v961
  %v968 = vmul.f32 %v962, %v962
  %v969 = vmul.f32 %v963, %v963
  %v970 = vadd.f32 %v964, %v965
  %v971 = vsel %vm198, %v966, 0.0
  %v972 = vadd.f32 %v970, %v971
  %973 = vadd.xlane.f32.xlu0 %v972
  %v974 = vpop.xlane.xlu0 %973
  %v975 = vadd.f32 %v967, %v968
  %v976 = vsel %vm198, %v969, 0.0
  %v977 = vadd.f32 %v975, %v976
  %978 = vadd.xlane.f32.xlu0 %v977
  %v979 = vpop.xlane.xlu0 %978
  %v980 = vmul.f32 %v974, 0.0034722222
  %v981 = vmul.f32 %v979, 0.0034722222
  %v982 = vadd.f32 %v980, 0.001
  %v983 = vadd.f32 %v981, 0.001
  %v984 = vrsqrt.pop %v982
  %v985 = vrsqrt.pop %v983
  %v986 = vmul.f32 %v958, %v984
  %v987 = vmul.f32 %v959, %v984
  %v988 = vmul.f32 %v960, %v984
  %v989 = vmul.f32 %v961, %v985
  %v990 = vmul.f32 %v962, %v985
  %v991 = vmul.f32 %v963, %v985
  %993 = vset.pattern.permute.xlu0 0
  %994 = vperm.xlu0 %993, %v942
  %v995 = vpop.permute.xlu0 %994
  %998 = vset.pattern.permute.xlu0 0
  %999 = vperm.xlu0 %998, %v943
  %v1000 = vpop.permute.xlu0 %999
  %v1002 = vmul.f32 %v986, %v995
  %v1003 = vmul.f32 %v987, %v995
  %v1004 = vmul.f32 %v988, %v995
  %v1005 = vmul.f32 %v989, %v1000
  %v1006 = vmul.f32 %v990, %v1000
  %v1007 = vmul.f32 %v991, %v1000
  %1009 = vset.pattern.permute.xlu0 0
  %1010 = vperm.xlu0 %1009, %v944
  %v1011 = vpop.permute.xlu0 %1010
  %1014 = vset.pattern.permute.xlu0 0
  %1015 = vperm.xlu0 %1014, %v945
  %v1016 = vpop.permute.xlu0 %1015
  %v1018 = vadd.f32 %v1002, %v1011
  %v1019 = vadd.f32 %v1003, %v1011
  %v1020 = vadd.f32 %v1004, %v1011
  %v1021 = vadd.f32 %v1005, %v1016
  %v1022 = vadd.f32 %v1006, %v1016
  %v1023 = vadd.f32 %v1007, %v1016
  %vm1024 = vcmp.gt.f32.partialorder %v1018, 20.0
  %vm1025 = vcmp.gt.f32.partialorder %v1019, 20.0
  %vm1026 = vcmp.gt.f32.partialorder %v1020, 20.0
  %vm1027 = vcmp.gt.f32.partialorder %v1021, 20.0
  %vm1028 = vcmp.gt.f32.partialorder %v1022, 20.0
  %vm1029 = vcmp.gt.f32.partialorder %v1023, 20.0
  %v1030 = vmin.f32 %v1018, 20.0
  %v1031 = vmin.f32 %v1019, 20.0
  %v1032 = vmin.f32 %v1020, 20.0
  %v1033 = vmin.f32 %v1021, 20.0
  %v1034 = vmin.f32 %v1022, 20.0
  %v1035 = vmin.f32 %v1023, 20.0
  %v1036 = vmul.f32 %v1030, 1.442695
  %v1037 = vpow.pop %v1036
  %v1038 = vmul.f32 %v1031, 1.442695
  %v1039 = vpow.pop %v1038
  %v1040 = vmul.f32 %v1032, 1.442695
  %v1041 = vpow.pop %v1040
  %v1042 = vmul.f32 %v1033, 1.442695
  %v1043 = vpow.pop %v1042
  %v1044 = vmul.f32 %v1034, 1.442695
  %v1045 = vpow.pop %v1044
  %v1046 = vmul.f32 %v1035, 1.442695
  %v1047 = vpow.pop %v1046
  %v1048 = vadd.f32 %v1037, 1.0
  %v1049 = vadd.f32 %v1039, 1.0
  %v1050 = vadd.f32 %v1041, 1.0
  %v1051 = vadd.f32 %v1043, 1.0
  %v1052 = vadd.f32 %v1045, 1.0
  %v1053 = vadd.f32 %v1047, 1.0
  %v1054 = vlog2.pop %v1048
  %v1055 = vmul.f32 %v1054, 0.6931472
  %v1056 = vlog2.pop %v1049
  %v1057 = vmul.f32 %v1056, 0.6931472
  %v1058 = vlog2.pop %v1050
  %v1059 = vmul.f32 %v1058, 0.6931472
  %v1060 = vlog2.pop %v1051
  %v1061 = vmul.f32 %v1060, 0.6931472
  %v1062 = vlog2.pop %v1052
  %v1063 = vmul.f32 %v1062, 0.6931472
  %v1064 = vlog2.pop %v1053
  %v1065 = vmul.f32 %v1064, 0.6931472
  %v1066 = vsel %vm1024, %v1018, %v1055
  %v1067 = vsel %vm1025, %v1019, %v1057
  %v1068 = vsel %vm1026, %v1020, %v1059
  %v1069 = vsel %vm1027, %v1021, %v1061
  %v1070 = vsel %vm1028, %v1022, %v1063
  %v1071 = vsel %vm1029, %v1023, %v1065
  %v1072 = vpack.c.bf16 %v1069, %v1066
  %v1073 = vpack.c.bf16 %v1070, %v1067
  %v1074 = vpack.c.bf16 %v1071, %v1068
  %1075 = vst [vmem:[#allocation3 + $0x8] sm:$0xff] %v1072
  %1076 = vst [vmem:[#allocation3 + $0x10] sm:$0xff] %v1073
  %1077 = vst.msk [vmem:[#allocation3 + $0x18] sm:$0xff] %vm198, %v1074
  %v1078 = vld [vmem:[#allocation3] sm:$0xff]
  %v1079 = vld [vmem:[#allocation3 + $0x8] sm:$0xff]
  %v1080 = vld [vmem:[#allocation3 + $0x10] sm:$0xff]
  %v1081 = vld [vmem:[#allocation3 + $0x18] sm:$0xff]
  %v1082 = vmul.bf16 %v1078, %v376
  %v1083 = vmul.bf16 %v1079, %v382
  %v1084 = vmul.bf16 %v1080, %v383
  %v1085 = vmul.bf16 %v1081, %v380
  %1090 = vrot.lane.b32.xlu0 %v1082, 13
  %v1091 = vpop.permute.xlu0 %1090
  %1092 = vrot.lane.b32.xlu0 %v1083, 13
  %v1093 = vpop.permute.xlu0 %1092
  %1094 = vrot.lane.b32.xlu0 %v1084, 13
  %v1095 = vpop.permute.xlu0 %1094
  %1096 = vrot.lane.b32.xlu0 %v1085, 13
  %v1097 = vpop.permute.xlu0 %1096
  %v1098 = vsel %vm404, %v1091, %v1093
  %v1099 = vsel %vm404, %v1093, %v1095
  %v1100 = vsel %vm404, %v1095, %v1097
  %1104 = vst [vmem:[#allocation2] sm:$0xff] %v1098
  %1105 = vst [vmem:[#allocation2 + $0x8] sm:$0xff] %v1099
  %1106 = vst.msk [vmem:[#allocation2 + $0x10] sm:$0xff] %vm198, %v1100
  %v1107 = vld [vmem:[#allocation3] sm:$0xff]
  %v1108 = vld [vmem:[#allocation3 + $0x8] sm:$0xff]
  %v1109 = vld [vmem:[#allocation3 + $0x10] sm:$0xff]
  %v1110 = vld [vmem:[#allocation3 + $0x18] sm:$0xff]
  %v1111 = vmul.bf16 %v1107, %v443
  %v1112 = vmul.bf16 %v1108, %v449
  %v1113 = vmul.bf16 %v1109, %v450
  %v1114 = vmul.bf16 %v1110, %v447
  %1119 = vrot.lane.b32.xlu0 %v1111, 12
  %v1120 = vpop.permute.xlu0 %1119
  %1121 = vrot.lane.b32.xlu0 %v1112, 12
  %v1122 = vpop.permute.xlu0 %1121
  %1123 = vrot.lane.b32.xlu0 %v1113, 12
  %v1124 = vpop.permute.xlu0 %1123
  %1125 = vrot.lane.b32.xlu0 %v1114, 12
  %v1126 = vpop.permute.xlu0 %1125
  %v1127 = vsel %vm471, %v1120, %v1122
  %v1128 = vsel %vm471, %v1122, %v1124
  %v1129 = vsel %vm471, %v1124, %v1126
  %1133 = vst [vmem:[#allocation2 + $0x18] sm:$0xff] %v1127
  %1134 = vst [vmem:[#allocation2 + $0x20] sm:$0xff] %v1128
  %1135 = vst.msk [vmem:[#allocation2 + $0x28] sm:$0xff] %vm198, %v1129
  %v1136 = vld [vmem:[#allocation3] sm:$0xff]
  %v1137 = vld [vmem:[#allocation3 + $0x8] sm:$0xff]
  %v1138 = vld [vmem:[#allocation3 + $0x10] sm:$0xff]
  %v1139 = vld [vmem:[#allocation3 + $0x18] sm:$0xff]
  %v1140 = vmul.bf16 %v1136, %v501
  %v1141 = vmul.bf16 %v1137, %v507
  %v1142 = vmul.bf16 %v1138, %v508
  %v1143 = vmul.bf16 %v1139, %v505
  %1148 = vrot.lane.b32.xlu0 %v1140, 11
  %v1149 = vpop.permute.xlu0 %1148
  %1150 = vrot.lane.b32.xlu0 %v1141, 11
  %v1151 = vpop.permute.xlu0 %1150
  %1152 = vrot.lane.b32.xlu0 %v1142, 11
  %v1153 = vpop.permute.xlu0 %1152
  %1154 = vrot.lane.b32.xlu0 %v1143, 11
  %v1155 = vpop.permute.xlu0 %1154
  %v1156 = vsel %vm529, %v1149, %v1151
  %v1157 = vsel %vm529, %v1151, %v1153
  %v1158 = vsel %vm529, %v1153, %v1155
  %1162 = vst [vmem:[#allocation2 + $0x30] sm:$0xff] %v1156
  %1163 = vst [vmem:[#allocation2 + $0x38] sm:$0xff] %v1157
  %1164 = vst.msk [vmem:[#allocation2 + $0x40] sm:$0xff] %vm198, %v1158
  %v1165 = vld [vmem:[#allocation3] sm:$0xff]
  %v1166 = vld [vmem:[#allocation3 + $0x8] sm:$0xff]
  %v1167 = vld [vmem:[#allocation3 + $0x10] sm:$0xff]
  %v1168 = vld [vmem:[#allocation3 + $0x18] sm:$0xff]
  %v1169 = vmul.bf16 %v1165, %v559
  %v1170 = vmul.bf16 %v1166, %v565
  %v1171 = vmul.bf16 %v1167, %v566
  %v1172 = vmul.bf16 %v1168, %v563
  %1177 = vrot.lane.b32.xlu0 %v1169, 1
  %v1178 = vpop.permute.xlu0 %1177
  %1179 = vrot.lane.b32.xlu0 %v1170, 1
  %v1180 = vpop.permute.xlu0 %1179
  %1181 = vrot.lane.b32.xlu0 %v1171, 1
  %v1182 = vpop.permute.xlu0 %1181
  %1183 = vrot.lane.b32.xlu0 %v1172, 1
  %v1184 = vpop.permute.xlu0 %1183
  %v1185 = vsel %vm587, %v1178, %v1180
  %v1186 = vsel %vm587, %v1180, %v1182
  %v1187 = vsel %vm587, %v1182, %v1184
  %1191 = vst [vmem:[#allocation2 + $0x48] sm:$0xff] %v1185
  %1192 = vst [vmem:[#allocation2 + $0x50] sm:$0xff] %v1186
  %1193 = vst.msk [vmem:[#allocation2 + $0x58] sm:$0xff] %vm198, %v1187
  %v1194 = vld [vmem:[#allocation3 + $0x8] sm:$0xff]
  %v1195 = vld [vmem:[#allocation3 + $0x10] sm:$0xff]
  %v1196 = vld [vmem:[#allocation3 + $0x18] sm:$0xff]
  %1197 = vst [vmem:[#allocation2 + $0x60] sm:$0xff] %v1194
  %1198 = vst [vmem:[#allocation2 + $0x68] sm:$0xff] %v1195
  %1199 = vst.msk [vmem:[#allocation2 + $0x70] sm:$0xff] %vm198, %v1196
  %v1200 = vld [vmem:[#allocation3 + $0x8] sm:$0xff]
  %v1201 = vld [vmem:[#allocation3 + $0x10] sm:$0xff]
  %v1202 = vld [vmem:[#allocation3 + $0x18] sm:$0xff]
  %v1203 = vmul.bf16 %v1200, %v622
  %v1204 = vmul.bf16 %v1201, %v627
  %v1205 = vmul.bf16 %v1202, %v628
  %1209 = vrot.lane.b32.xlu0 %v1203, 127
  %v1210 = vpop.permute.xlu0 %1209
  %1211 = vrot.lane.b32.xlu0 %v1204, 127
  %v1212 = vpop.permute.xlu0 %1211
  %1213 = vrot.lane.b32.xlu0 %v1205, 127
  %v1214 = vpop.permute.xlu0 %1213
  %v1215 = vsel %vm564, %v1210, %v1212
  %v1216 = vsel %vm564, %v1212, %v1214
  %1220 = vst [vmem:[#allocation2 + $0x78] sm:$0xff] %v1215
  %1221 = vst [vmem:[#allocation2 + $0x80] sm:$0xff] %v1216
  %1222 = vst.msk [vmem:[#allocation2 + $0x88] sm:$0xff] %vm198, %v1214
  %v1223 = vld [vmem:[#allocation3 + $0x8] sm:$0xff]
  %v1224 = vld [vmem:[#allocation3 + $0x10] sm:$0xff]
  %v1225 = vld [vmem:[#allocation3 + $0x18] sm:$0xff]
  %v1226 = vmul.bf16 %v1223, %v671
  %v1227 = vmul.bf16 %v1224, %v676
  %v1228 = vmul.bf16 %v1225, %v677
  %1232 = vrot.lane.b32.xlu0 %v1226, 117
  %v1233 = vpop.permute.xlu0 %1232
  %1234 = vrot.lane.b32.xlu0 %v1227, 117
  %v1235 = vpop.permute.xlu0 %1234
  %1236 = vrot.lane.b32.xlu0 %v1228, 117
  %v1237 = vpop.permute.xlu0 %1236
  %v1238 = vsel %vm506, %v1233, %v1235
  %v1239 = vsel %vm506, %v1235, %v1237
  %1243 = vst [vmem:[#allocation2 + $0x90] sm:$0xff] %v1238
  %1244 = vst [vmem:[#allocation2 + $0x98] sm:$0xff] %v1239
  %1245 = vst.msk [vmem:[#allocation2 + $0xa0] sm:$0xff] %vm198, %v1237
  %v1246 = vld [vmem:[#allocation3 + $0x8] sm:$0xff]
  %v1247 = vld [vmem:[#allocation3 + $0x10] sm:$0xff]
  %v1248 = vld [vmem:[#allocation3 + $0x18] sm:$0xff]
  %v1249 = vmul.bf16 %v1246, %v720
  %v1250 = vmul.bf16 %v1247, %v725
  %v1251 = vmul.bf16 %v1248, %v726
  %1255 = vrot.lane.b32.xlu0 %v1249, 116
  %v1256 = vpop.permute.xlu0 %1255
  %1257 = vrot.lane.b32.xlu0 %v1250, 116
  %v1258 = vpop.permute.xlu0 %1257
  %1259 = vrot.lane.b32.xlu0 %v1251, 116
  %v1260 = vpop.permute.xlu0 %1259
  %v1261 = vsel %vm448, %v1256, %v1258
  %v1262 = vsel %vm448, %v1258, %v1260
  %1266 = vst [vmem:[#allocation2 + $0xa8] sm:$0xff] %v1261
  %1267 = vst [vmem:[#allocation2 + $0xb0] sm:$0xff] %v1262
  %1268 = vst.msk [vmem:[#allocation2 + $0xb8] sm:$0xff] %vm198, %v1260
  %v1269 = vld [vmem:[#allocation3 + $0x8] sm:$0xff]
  %v1270 = vld [vmem:[#allocation3 + $0x10] sm:$0xff]
  %v1271 = vld [vmem:[#allocation3 + $0x18] sm:$0xff]
  %v1272 = vmul.bf16 %v1269, %v786
  %v1273 = vmul.bf16 %v1270, %v791
  %v1274 = vmul.bf16 %v1271, %v792
  %1278 = vrot.lane.b32.xlu0 %v1272, 115
  %v1279 = vpop.permute.xlu0 %1278
  %1280 = vrot.lane.b32.xlu0 %v1273, 115
  %v1281 = vpop.permute.xlu0 %1280
  %1282 = vrot.lane.b32.xlu0 %v1274, 115
  %v1283 = vpop.permute.xlu0 %1282
  %v1284 = vsel %vm381, %v1279, %v1281
  %v1285 = vsel %vm381, %v1281, %v1283
  %1289 = vst [vmem:[#allocation2 + $0xc0] sm:$0xff] %v1284
  %1290 = vst [vmem:[#allocation2 + $0xc8] sm:$0xff] %v1285
  %1291 = vst.msk [vmem:[#allocation2 + $0xd0] sm:$0xff] %vm198, %v1283
  %v1292 = vld [vmem:[%s7] sm:$0xff]
  %v1293 = vld [vmem:[%s7 + $0x8] sm:$0xff]
  %v1294 = vld [vmem:[#allocation2] sm:$0xff]
  %v1295 = vld [vmem:[#allocation2 + $0x8] sm:$0xff]
  %v1296 = vld [vmem:[#allocation2 + $0x10] sm:$0xff]
  %v1297 = vld [vmem:[#allocation2 + $0x18] sm:$0xff]
  %v1298 = vld [vmem:[#allocation2 + $0x20] sm:$0xff]
  %v1299 = vld [vmem:[#allocation2 + $0x28] sm:$0xff]
  %v1300 = vld [vmem:[#allocation2 + $0x30] sm:$0xff]
  %v1301 = vld [vmem:[#allocation2 + $0x38] sm:$0xff]
  %v1302 = vld [vmem:[#allocation2 + $0x40] sm:$0xff]
  %v1303 = vld [vmem:[#allocation2 + $0x48] sm:$0xff]
  %v1304 = vld [vmem:[#allocation2 + $0x50] sm:$0xff]
  %v1305 = vld [vmem:[#allocation2 + $0x58] sm:$0xff]
  %v1306 = vld [vmem:[#allocation2 + $0x60] sm:$0xff]
  %v1307 = vld [vmem:[#allocation2 + $0x68] sm:$0xff]
  %v1308 = vld [vmem:[#allocation2 + $0x70] sm:$0xff]
  %v1309 = vld [vmem:[#allocation2 + $0x78] sm:$0xff]
  %v1310 = vld [vmem:[#allocation2 + $0x80] sm:$0xff]
  %v1311 = vld [vmem:[#allocation2 + $0x88] sm:$0xff]
  %v1312 = vld [vmem:[#allocation2 + $0x90] sm:$0xff]
  %v1313 = vld [vmem:[#allocation2 + $0x98] sm:$0xff]
  %v1314 = vld [vmem:[#allocation2 + $0xa0] sm:$0xff]
  %v1315 = vld [vmem:[#allocation2 + $0xa8] sm:$0xff]
  %v1316 = vld [vmem:[#allocation2 + $0xb0] sm:$0xff]
  %v1317 = vld [vmem:[#allocation2 + $0xb8] sm:$0xff]
  %v1318 = vld [vmem:[#allocation2 + $0xc0] sm:$0xff]
  %v1319 = vld [vmem:[#allocation2 + $0xc8] sm:$0xff]
  %v1320 = vld [vmem:[#allocation2 + $0xd0] sm:$0xff]
  %v1323 = vunpack.c.l.b16 %v1292
  %v1324 = vunpack.c.h.b16 %v1292
  %v1325 = vunpack.c.l.b16 %v1293
  %v1326 = vunpack.c.h.b16 %v1293
  %v1327 = vpack.c.b16 %v1325, %v1323
  %v1328 = vpack.c.b16 %v1326, %v1324
  %v1331 = vsel %vm854, %v1328, 0
  %1333 = vmatprep.subr.bf16.mxu0 %v1295
  %1334 = vmatpush1.bf16.msra.mxu0 %v1294
  %1335 = vmatprep.subr.bf16.mxu0 %v1298
  %1336 = vmatpush1.bf16.msra.mxu0 %v1297
  %1337 = vmatprep.subr.bf16.mxu0 %v1301
  %1338 = vmatpush1.bf16.msra.mxu0 %v1300
  %1339 = vmatprep.subr.bf16.mxu0 %v1304
  %1340 = vmatpush1.bf16.msra.mxu0 %v1303
  %1341 = vmatprep.subr.bf16.mxu0 %v1307
  %1342 = vmatpush1.bf16.msra.mxu0 %v1306
  %1343 = vmatprep.subr.bf16.mxu0 %v1310
  %1344 = vmatpush1.bf16.msra.mxu0 %v1309
  %1345 = vmatprep.subr.bf16.mxu0 %v1313
  %1346 = vmatpush1.bf16.msra.mxu0 %v1312
  %1347 = vmatprep.subr.bf16.mxu0 %v1316
  %1348 = vmatpush1.bf16.msra.mxu0 %v1315
  %1349 = vmatprep.subr.bf16.mxu0 %v1319
  %1350 = vmatpush1.bf16.msra.mxu0 %v1318
  %1351 = vmatprep.subr.bf16.mxu0 0
  %1352 = vmatpush1.bf16.msra.mxu0 0
  %1353 = vmatprep.subr.bf16.mxu0 0
  %1354 = vmatpush1.bf16.msra.mxu0 0
  %1355 = vmatprep.subr.bf16.mxu0 0
  %1356 = vmatpush1.bf16.msra.mxu0 0
  %1357 = vmatprep.subr.bf16.mxu0 0
  %1358 = vmatpush1.bf16.msra.mxu0 0
  %1359 = vmatprep.subr.bf16.mxu0 0
  %1360 = vmatpush1.bf16.msra.mxu0 0
  %1361 = vmatprep.subr.bf16.mxu0 0
  %1362 = vmatpush1.bf16.msra.mxu0 0
  %1363 = vmatprep.subr.bf16.mxu0 0
  %1364 = vmatpush1.bf16.msra.mxu0 0
  %1365 = vmatprep.mubr.bf16.mxu0 %v1331
  %1366 = vmatmul.mubr.bf16.gmra.mrb[0].mxu0 %v1327
  %v1367 = vpop.f32.mrb[0].mxu0
  %v1368 = vadd.f32 0.0, %v1367
  %v1369 = vpop.f32.mrb[0].mxu0
  %v1370 = vadd.f32 0.0, %v1369
  %v1371 = vpop.f32.mrb[0].mxu0
  %v1372 = vadd.f32 0.0, %v1371
  %v1373 = vpop.f32.mrb[0].mxu0
  %v1374 = vadd.f32 0.0, %v1373
  %1375 = vdwg.mxu0
  %1376 = vmatprep.subr.bf16.mxu0 0
  %1377 = vmatpush1.bf16.msra.mxu0 %v1296
  %1378 = vmatprep.subr.bf16.mxu0 0
  %1379 = vmatpush1.bf16.msra.mxu0 %v1299
  %1380 = vmatprep.subr.bf16.mxu0 0
  %1381 = vmatpush1.bf16.msra.mxu0 %v1302
  %1382 = vmatprep.subr.bf16.mxu0 0
  %1383 = vmatpush1.bf16.msra.mxu0 %v1305
  %1384 = vmatprep.subr.bf16.mxu0 0
  %1385 = vmatpush1.bf16.msra.mxu0 %v1308
  %1386 = vmatprep.subr.bf16.mxu0 0
  %1387 = vmatpush1.bf16.msra.mxu0 %v1311
  %1388 = vmatprep.subr.bf16.mxu0 0
  %1389 = vmatpush1.bf16.msra.mxu0 %v1314
  %1390 = vmatprep.subr.bf16.mxu0 0
  %1391 = vmatpush1.bf16.msra.mxu0 %v1317
  %1392 = vmatprep.subr.bf16.mxu0 0
  %1393 = vmatpush1.bf16.msra.mxu0 %v1320
  %1394 = vmatprep.subr.bf16.mxu0 0
  %1395 = vmatpush1.bf16.msra.mxu0 0
  %1396 = vmatprep.subr.bf16.mxu0 0
  %1397 = vmatpush1.bf16.msra.mxu0 0
  %1398 = vmatprep.subr.bf16.mxu0 0
  %1399 = vmatpush1.bf16.msra.mxu0 0
  %1400 = vmatprep.subr.bf16.mxu0 0
  %1401 = vmatpush1.bf16.msra.mxu0 0
  %1402 = vmatprep.subr.bf16.mxu0 0
  %1403 = vmatpush1.bf16.msra.mxu0 0
  %1404 = vmatprep.subr.bf16.mxu0 0
  %1405 = vmatpush1.bf16.msra.mxu0 0
  %1406 = vmatprep.subr.bf16.mxu0 0
  %1407 = vmatpush1.bf16.msra.mxu0 0
  %1408 = vmatprep.mubr.bf16.mxu0 %v1331
  %1409 = vmatmul.mubr.bf16.gmra.mrb[0].mxu0 %v1327
  %v1410 = vpop.f32.mrb[0].mxu0
  %v1411 = vadd.f32 0.0, %v1410
  %v1412 = vpop.f32.mrb[0].mxu0
  %v1413 = vpop.f32.mrb[0].mxu0
  %v1414 = vadd.f32 0.0, %v1413
  %v1415 = vpop.f32.mrb[0].mxu0
  %1416 = vdwg.mxu0
  %v1417 = vld [vmem:[%s8] sm:$0xff]
  %v1418 = vld [vmem:[%s8 + $0x8] sm:$0xff]
  %v1419 = vld [vmem:[%s9] sm:$0xff]
  %v1420 = vld [vmem:[%s9 + $0x8] sm:$0xff]
  %v1421 = vadd.f32 %v1368, %v1370
  %v1422 = vsel %vm198, %v1411, 0.0
  %v1423 = vadd.f32 %v1421, %v1422
  %1424 = vadd.xlane.f32.xlu0 %v1423
  %v1425 = vpop.xlane.xlu0 %1424
  %v1426 = vadd.f32 %v1372, %v1374
  %v1427 = vsel %vm198, %v1414, 0.0
  %v1428 = vadd.f32 %v1426, %v1427
  %1429 = vadd.xlane.f32.xlu0 %v1428
  %v1430 = vpop.xlane.xlu0 %1429
  %v1431 = vmul.f32 %v1425, 0.0034722222
  %v1432 = vmul.f32 %v1430, 0.0034722222
  %v1433 = vsub.f32 %v1368, %v1431
  %v1434 = vsub.f32 %v1370, %v1431
  %v1435 = vsub.f32 %v1411, %v1431
  %v1436 = vsub.f32 %v1372, %v1432
  %v1437 = vsub.f32 %v1374, %v1432
  %v1438 = vsub.f32 %v1414, %v1432
  %v1439 = vmul.f32 %v1433, %v1433
  %v1440 = vmul.f32 %v1434, %v1434
  %v1441 = vmul.f32 %v1435, %v1435
  %v1442 = vmul.f32 %v1436, %v1436
  %v1443 = vmul.f32 %v1437, %v1437
  %v1444 = vmul.f32 %v1438, %v1438
  %v1445 = vadd.f32 %v1439, %v1440
  %v1446 = vsel %vm198, %v1441, 0.0
  %v1447 = vadd.f32 %v1445, %v1446
  %1448 = vadd.xlane.f32.xlu0 %v1447
  %v1449 = vpop.xlane.xlu0 %1448
  %v1450 = vadd.f32 %v1442, %v1443
  %v1451 = vsel %vm198, %v1444, 0.0
  %v1452 = vadd.f32 %v1450, %v1451
  %1453 = vadd.xlane.f32.xlu0 %v1452
  %v1454 = vpop.xlane.xlu0 %1453
  %v1455 = vmul.f32 %v1449, 0.0034722222
  %v1456 = vmul.f32 %v1454, 0.0034722222
  %v1457 = vadd.f32 %v1455, 0.001
  %v1458 = vadd.f32 %v1456, 0.001
  %v1459 = vrsqrt.pop %v1457
  %v1460 = vrsqrt.pop %v1458
  %v1461 = vmul.f32 %v1433, %v1459
  %v1462 = vmul.f32 %v1434, %v1459
  %v1463 = vmul.f32 %v1435, %v1459
  %v1464 = vmul.f32 %v1436, %v1460
  %v1465 = vmul.f32 %v1437, %v1460
  %v1466 = vmul.f32 %v1438, %v1460
  %1468 = vset.pattern.permute.xlu0 0
  %1469 = vperm.xlu0 %1468, %v1417
  %v1470 = vpop.permute.xlu0 %1469
  %1473 = vset.pattern.permute.xlu0 0
  %1474 = vperm.xlu0 %1473, %v1418
  %v1475 = vpop.permute.xlu0 %1474
  %v1477 = vmul.f32 %v1461, %v1470
  %v1478 = vmul.f32 %v1462, %v1470
  %v1479 = vmul.f32 %v1463, %v1470
  %v1480 = vmul.f32 %v1464, %v1475
  %v1481 = vmul.f32 %v1465, %v1475
  %v1482 = vmul.f32 %v1466, %v1475
  %1484 = vset.pattern.permute.xlu0 0
  %1485 = vperm.xlu0 %1484, %v1419
  %v1486 = vpop.permute.xlu0 %1485
  %1489 = vset.pattern.permute.xlu0 0
  %1490 = vperm.xlu0 %1489, %v1420
  %v1491 = vpop.permute.xlu0 %1490
  %v1493 = vadd.f32 %v1477, %v1486
  %v1494 = vadd.f32 %v1478, %v1486
  %v1495 = vadd.f32 %v1479, %v1486
  %v1496 = vadd.f32 %v1480, %v1491
  %v1497 = vadd.f32 %v1481, %v1491
  %v1498 = vadd.f32 %v1482, %v1491
  %v1499 = vld [vmem:[%s11] sm:$0xff]
  %v1500 = vld [vmem:[%s11 + $0x8] sm:$0xff]
  %v1501 = vld [vmem:[%s11 + $0x10] sm:$0xff]
  %v1502 = vld [vmem:[%s11 + $0x18] sm:$0xff]
  %v1503 = vld [vmem:[%s11 + $0x20] sm:$0xff]
  %v1504 = vld [vmem:[%s11 + $0x28] sm:$0xff]
  %v1505 = vld [vmem:[%s11 + $0x30] sm:$0xff]
  %v1506 = vld [vmem:[%s11 + $0x38] sm:$0xff]
  %v1507 = vld [vmem:[%s11 + $0x40] sm:$0xff]
  %v1508 = vld [vmem:[%s11 + $0x48] sm:$0xff]
  %v1509 = vld [vmem:[%s11 + $0x50] sm:$0xff]
  %v1510 = vld [vmem:[%s11 + $0x58] sm:$0xff]
  %v1511 = vld [vmem:[%s11 + $0x60] sm:$0xff]
  %v1512 = vld [vmem:[%s11 + $0x68] sm:$0xff]
  %v1513 = vld [vmem:[%s11 + $0x70] sm:$0xff]
  %v1514 = vld [vmem:[%s11 + $0x78] sm:$0xff]
  %v1515 = vld [vmem:[%s11 + $0x80] sm:$0xff]
  %v1516 = vld [vmem:[%s11 + $0x88] sm:$0xff]
  %v1517 = vld [vmem:[%s11 + $0x90] sm:$0xff]
  %v1518 = vld [vmem:[%s11 + $0x98] sm:$0xff]
  %v1519 = vld [vmem:[%s11 + $0xa0] sm:$0xff]
  %v1520 = vld [vmem:[%s11 + $0xa8] sm:$0xff]
  %v1521 = vld [vmem:[%s11 + $0xb0] sm:$0xff]
  %v1522 = vld [vmem:[%s11 + $0xb8] sm:$0xff]
  %v1523 = vld [vmem:[%s11 + $0xc0] sm:$0xff]
  %v1524 = vld [vmem:[%s11 + $0xc8] sm:$0xff]
  %v1525 = vld [vmem:[%s11 + $0xd0] sm:$0xff]
  %v1526 = vld [vmem:[%s11 + $0xd8] sm:$0xff]
  %v1527 = vld [vmem:[%s11 + $0xe0] sm:$0xff]
  %v1528 = vld [vmem:[%s11 + $0xe8] sm:$0xff]
  %v1529 = vld [vmem:[%s11 + $0xf0] sm:$0xff]
  %v1530 = vld [vmem:[%s11 + $0xf8] sm:$0xff]
  %v1531 = vld [vmem:[%s11 + $0x100] sm:$0xff]
  %v1532 = vld [vmem:[%s11 + $0x108] sm:$0xff]
  %v1533 = vld [vmem:[%s11 + $0x110] sm:$0xff]
  %v1534 = vld [vmem:[%s11 + $0x118] sm:$0xff]
  %v1536 = vsel %vm198, %v1495, 0
  %v1539 = vsel %vm198, %v1498, 0
  %1541 = vmatprep.subr.mxu0 0.0
  %1542 = vmatpush1.msra.mxu0 %v1499
  %1543 = vmatprep.subr.mxu0 0.0
  %1544 = vmatpush1.msra.mxu0 %v1500
  %1545 = vmatprep.subr.mxu0 0.0
  %1546 = vmatpush1.msra.mxu0 %v1501
  %1547 = vmatprep.subr.mxu0 0.0
  %1548 = vmatpush1.msra.mxu0 %v1502
  %1549 = vmatprep.subr.mxu0 0.0
  %1550 = vmatpush1.msra.mxu0 %v1503
  %1551 = vmatprep.subr.mxu0 0.0
  %1552 = vmatpush1.msra.mxu0 %v1504
  %1553 = vmatprep.subr.mxu0 0.0
  %1554 = vmatpush1.msra.mxu0 %v1505
  %1555 = vmatprep.subr.mxu0 0.0
  %1556 = vmatpush1.msra.mxu0 %v1506
  %1557 = vmatprep.subr.mxu0 0.0
  %1558 = vmatpush1.msra.mxu0 %v1507
  %1559 = vmatprep.subr.mxu0 0.0
  %1560 = vmatpush1.msra.mxu0 %v1508
  %1561 = vmatprep.subr.mxu0 0.0
  %1562 = vmatpush1.msra.mxu0 %v1509
  %1563 = vmatprep.subr.mxu0 0.0
  %1564 = vmatpush1.msra.mxu0 %v1510
  %1565 = vmatprep.subr.mxu0 0.0
  %1566 = vmatpush1.msra.mxu0 %v1511
  %1567 = vmatprep.subr.mxu0 0.0
  %1568 = vmatpush1.msra.mxu0 %v1512
  %1569 = vmatprep.subr.mxu0 0.0
  %1570 = vmatpush1.msra.mxu0 %v1513
  %1571 = vmatprep.subr.mxu0 0.0
  %1572 = vmatpush1.msra.mxu0 %v1514
  %1573 = vmatprep.subr.mxu0 0.0
  %1574 = vmatpush1.msra.mxu0 %v1515
  %1575 = vmatprep.subr.mxu0 0.0
  %1576 = vmatpush1.msra.mxu0 %v1516
  %1577 = vmatprep.subr.mxu0 0.0
  %1578 = vmatpush1.msra.mxu0 %v1517
  %1579 = vmatprep.subr.mxu0 0.0
  %1580 = vmatpush1.msra.mxu0 %v1518
  %1581 = vmatprep.subr.mxu0 0.0
  %1582 = vmatpush1.msra.mxu0 %v1519
  %1583 = vmatprep.subr.mxu0 0.0
  %1584 = vmatpush1.msra.mxu0 %v1520
  %1585 = vmatprep.subr.mxu0 0.0
  %1586 = vmatpush1.msra.mxu0 %v1521
  %1587 = vmatprep.subr.mxu0 0.0
  %1588 = vmatpush1.msra.mxu0 %v1522
  %1589 = vmatprep.subr.mxu0 0.0
  %1590 = vmatpush1.msra.mxu0 %v1523
  %1591 = vmatprep.subr.mxu0 0.0
  %1592 = vmatpush1.msra.mxu0 %v1524
  %1593 = vmatprep.subr.mxu0 0.0
  %1594 = vmatpush1.msra.mxu0 %v1525
  %1595 = vmatprep.subr.mxu0 0.0
  %1596 = vmatpush1.msra.mxu0 %v1526
  %1597 = vmatprep.subr.mxu0 0.0
  %1598 = vmatpush1.msra.mxu0 %v1527
  %1599 = vmatprep.subr.mxu0 0.0
  %1600 = vmatpush1.msra.mxu0 %v1528
  %1601 = vmatprep.subr.mxu0 0.0
  %1602 = vmatpush1.msra.mxu0 %v1529
  %1603 = vmatprep.subr.mxu0 0.0
  %1604 = vmatpush1.msra.mxu0 %v1530
  %1605 = vmatprep.mubr.f32.mxu0 %v1494
  %1606 = vmatmul.mubr.f32.gmra.mrb[0].mxu0 %v1493
  %v1607 = vpop.f32.mrb[0].mxu0
  %v1608 = vadd.f32 0.0, %v1607
  %v1609 = vpop.f32.mrb[0].mxu0
  %1610 = vmatprep.mubr.f32.mxu0 %v1497
  %1611 = vmatmul.mubr.f32.gmra.mrb[0].mxu0 %v1496
  %v1612 = vpop.f32.mrb[0].mxu0
  %v1613 = vadd.f32 0.0, %v1612
  %v1614 = vpop.f32.mrb[0].mxu0
  %1615 = vdwg.mxu0
  %1616 = vmatprep.subr.mxu0 0.0
  %1617 = vmatpush1.msra.mxu0 %v1531
  %1618 = vmatprep.subr.mxu0 0.0
  %1619 = vmatpush1.msra.mxu0 %v1532
  %1620 = vmatprep.subr.mxu0 0.0
  %1621 = vmatpush1.msra.mxu0 %v1533
  %1622 = vmatprep.subr.mxu0 0.0
  %1623 = vmatpush1.msra.mxu0 %v1534
  %1624 = vmatprep.subr.mxu0 0.0
  %1625 = vmatpush1.msra.mxu0 0.0
  %1626 = vmatprep.subr.mxu0 0.0
  %1627 = vmatpush1.msra.mxu0 0.0
  %1628 = vmatprep.subr.mxu0 0.0
  %1629 = vmatpush1.msra.mxu0 0.0
  %1630 = vmatprep.subr.mxu0 0.0
  %1631 = vmatpush1.msra.mxu0 0.0
  %1632 = vmatprep.subr.mxu0 0.0
  %1633 = vmatpush1.msra.mxu0 0.0
  %1634 = vmatprep.subr.mxu0 0.0
  %1635 = vmatpush1.msra.mxu0 0.0
  %1636 = vmatprep.subr.mxu0 0.0
  %1637 = vmatpush1.msra.mxu0 0.0
  %1638 = vmatprep.subr.mxu0 0.0
  %1639 = vmatpush1.msra.mxu0 0.0
  %1640 = vmatprep.subr.mxu0 0.0
  %1641 = vmatpush1.msra.mxu0 0.0
  %1642 = vmatprep.subr.mxu0 0.0
  %1643 = vmatpush1.msra.mxu0 0.0
  %1644 = vmatprep.subr.mxu0 0.0
  %1645 = vmatpush1.msra.mxu0 0.0
  %1646 = vmatprep.subr.mxu0 0.0
  %1647 = vmatpush1.msra.mxu0 0.0
  %1648 = vmatprep.subr.mxu0 0.0
  %1649 = vmatpush1.msra.mxu0 0.0
  %1650 = vmatprep.subr.mxu0 0.0
  %1651 = vmatpush1.msra.mxu0 0.0
  %1652 = vmatprep.subr.mxu0 0.0
  %1653 = vmatpush1.msra.mxu0 0.0
  %1654 = vmatprep.subr.mxu0 0.0
  %1655 = vmatpush1.msra.mxu0 0.0
  %1656 = vmatprep.subr.mxu0 0.0
  %1657 = vmatpush1.msra.mxu0 0.0
  %1658 = vmatprep.subr.mxu0 0.0
  %1659 = vmatpush1.msra.mxu0 0.0
  %1660 = vmatprep.subr.mxu0 0.0
  %1661 = vmatpush1.msra.mxu0 0.0
  %1662 = vmatprep.subr.mxu0 0.0
  %1663 = vmatpush1.msra.mxu0 0.0
  %1664 = vmatprep.subr.mxu0 0.0
  %1665 = vmatpush1.msra.mxu0 0.0
  %1666 = vmatprep.subr.mxu0 0.0
  %1667 = vmatpush1.msra.mxu0 0.0
  %1668 = vmatprep.subr.mxu0 0.0
  %1669 = vmatpush1.msra.mxu0 0.0
  %1670 = vmatprep.subr.mxu0 0.0
  %1671 = vmatpush1.msra.mxu0 0.0
  %1672 = vmatprep.subr.mxu0 0.0
  %1673 = vmatpush1.msra.mxu0 0.0
  %1674 = vmatprep.subr.mxu0 0.0
  %1675 = vmatpush1.msra.mxu0 0.0
  %1676 = vmatprep.subr.mxu0 0.0
  %1677 = vmatpush1.msra.mxu0 0.0
  %1678 = vmatprep.subr.mxu0 0.0
  %1679 = vmatpush1.msra.mxu0 0.0
  %1680 = vmatprep.mubr.f32.mxu0 0.0
  %1681 = vmatmul.mubr.f32.gmra.mrb[0].mxu0 %v1536
  %v1682 = vpop.f32.mrb[0].mxu0
  %v1683 = vadd.f32 %v1608, %v1682
  %v1684 = vpop.f32.mrb[0].mxu0
  %1685 = vmatprep.mubr.f32.mxu0 0.0
  %1686 = vmatmul.mubr.f32.gmra.mrb[0].mxu0 %v1539
  %v1687 = vpop.f32.mrb[0].mxu0
  %v1688 = vadd.f32 %v1613, %v1687
  %v1689 = vpop.f32.mrb[0].mxu0
  %1690 = vdwg.mxu0
  %v1691 = vld [vmem:[%s12] sm:$0xff]
  %v1692 = vld [vmem:[%s12 + $0x8] sm:$0xff]
  %v1693 = vmul.f32 %v1683, %v1691
  %v1694 = vmul.f32 %v1688, %v1692
  %v1695 = vsel %vm854, %v1693, 0.0
  %v1696 = vsel %vm854, %v1694, 0.0
  %v1697 = vadd.f32 %v1695, %v1696
  %v1698 = vrot.slane %v1697, 4
  %v1699 = vadd.f32 %v1697, %v1698
  %v1700 = vrot.slane %v1699, 2
  %v1701 = vadd.f32 %v1699, %v1700
  %v1702 = vrot.slane %v1701, 1
  %v1703 = vadd.f32 %v1701, %v1702
  %v1704 = vld [vmem:[%s13] sm:$0x1]
  %v1705 = vadd.f32 %v1703, %v1704
  %vm1706 = vcmp.gt.f32.partialorder %v1705, 20.0
  %v1707 = vmin.f32 %v1705, 20.0
  %v1708 = vmul.f32 %v1707, 1.442695
  %v1709 = vpow.pop %v1708
  %v1710 = vadd.f32 %v1709, 1.0
  %v1711 = vlog2.pop %v1710
  %v1712 = vmul.f32 %v1711, 0.6931472
  %v1713 = vsel %vm1706, %v1705, %v1712
  %vm1714 = vcmask 122880
  %1715 = vst.msk [vmem:[%s14] sm:$0x1] %vm1714, %v1713
  // Predicated region
  $region58: #{_lambda_.1} parent=0 // pred_check
    _
  $region59: #{_lambda_.1} parent=0 // pred_check_branch
    %1717 = sbr.rel (0) target = $region61
  $region60: #{_lambda_.1} parent=0 // pred_region
    _
  $region61: #{_lambda_.1} parent=0 // pred_fallthru
    _
  // Predicated region
  $region62: #{_lambda_.1} parent=0 // pred_check
    _
  $region63: #{_lambda_.1} parent=0 // pred_check_branch
    %1719 = sbr.rel (0) target = $region65
  $region64: #{_lambda_.1} parent=0 // pred_region
    _
  $region65: #{_lambda_.1} parent=0 // pred_fallthru
    _

</llo_original>
